<compile_context>
chip_gen: v7x
topology: tpu7x:2x2x1
jax: 0.10.0
libtpu: 0.0.40
codegen_flags: <defaults>
</compile_context>

<pallas_src>
import functools

import jax
import jax.numpy as jnp
from jax import lax
from jax.experimental import pallas as pl
from jax.experimental.pallas import tpu as pltpu


def _binconv2d2_kernel(x_ref, w_ref, bn_ref, cb_ref, out_ref, pad_scr, *, H, W):
    """One batch element per grid step.

    x_ref   : (1, Ci, H*W)      input, spatial flattened onto the lane axis
    w_ref   : (Co, 9*Ci)        conv weights, column index = (dy*3+dx)*Ci + c
    bn_ref  : (Ci, 2)           folded BN: [:,0]=scale, [:,1]=bias
    cb_ref  : (Co, 1)           conv bias
    out_ref : (1, Co, H*W)
    pad_scr : (Ci, H+3, W+2)    VMEM scratch: zero-bordered quantized act
                                (+1 slack row so all flat strips stay in-bounds)
    """
    Ci = x_ref.shape[1]
    Co = out_ref.shape[1]
    Wp2 = W + 2
    HW = H * W

    x = x_ref[0]                               # (Ci, HW), lane-dense

    # ---- BatchNorm (inference, folded to per-channel scale/bias) ----------
    scale = bn_ref[:, 0:1]                     # (Ci, 1), broadcast over lanes
    bias = bn_ref[:, 1:2]
    xb = x * scale + bias

    # ---- BinActive2: 2-bit quantization (mean / xmax outputs are unused) ---
    y_levels = 3.0                             # 2**num_bits - 1, num_bits = 2
    xq = (xb + 1.0) / 2.0
    xq = jnp.round(xq * y_levels) / y_levels
    xq = (xq - 0.5) * 2.0

    # ---- zero-pad into scratch (border + slack row zeroed every step) ------
    pad_scr[:, 0:1, :] = jnp.zeros((Ci, 1, Wp2), jnp.float32)          # top
    pad_scr[:, H + 1:H + 3, :] = jnp.zeros((Ci, 2, Wp2), jnp.float32)  # bottom + slack
    zcol = jnp.zeros((Ci, H, 1), jnp.float32)
    pad_scr[:, 1:H + 1, 0:1] = zcol                                    # left
    pad_scr[:, 1:H + 1, W + 1:W + 2] = zcol                            # right
    pad_scr[:, 1:H + 1, 1:W + 1] = xq.reshape(Ci, H, W)                # interior

    # ---- im2col via lane slices of the flattened padded activation ---------
    # For tap (dy, dx) the window x_pad[:, dy:dy+H, dx:dx+W], taken over full
    # padded rows, is the contiguous flat slice [dy*(W+2)+dx : ... + H*(W+2)].
    # The 2 extra columns per row carry wrapped garbage that only reaches
    # output columns >= W, which are discarded after the matmul.
    xp_flat = pad_scr[...].reshape(Ci, (H + 3) * Wp2)
    L = H * Wp2
    strips = []
    for dy in range(3):
        for dx in range(3):
            s0 = dy * Wp2 + dx
            strips.append(xp_flat[:, s0:s0 + L])
    patches = jnp.concatenate(strips, axis=0)            # (9*Ci, H*(W+2))

    # ---- single fused MXU contraction + bias --------------------------------
    y_ext = jnp.dot(w_ref[...], patches,
                    preferred_element_type=jnp.float32)  # (Co, H*(W+2))
    y_ext = y_ext + cb_ref[...]

    # Drop the 2 padded columns per row -> lane-dense (Co, H*W) store.
    out_ref[0] = y_ext.reshape(Co, H, Wp2)[:, :, 0:W].reshape(Co, HW)


def binconv2d2_forward(x_nchw, params, eps=1e-4):
    """BinConv2d2.forward. x_nchw: (N, Ci, H, W) f32 -> (N, Co, H, W) f32.

    Conv is 3x3, stride 1, padding 1 (the configuration used in the model).
    """
    w, b, gamma, beta, rm, rv = params
    Co, Ci, kH, kW = w.shape
    assert (kH, kW) == (3, 3), "kernel supports 3x3, stride 1, padding 1"
    N, C, H, W = x_nchw.shape
    assert C == Ci

    # Fold eval-mode BatchNorm (eps=1e-4) into per-channel scale / bias.
    s = gamma / jnp.sqrt(rv + eps)
    bn_bias = beta - rm * s
    bnp = jnp.stack([s, bn_bias], axis=1)                  # (Ci, 2)

    # Conv weights OIHW -> (Co, 9*Ci) with column index (dy*3+dx)*Ci + c.
    wk = jnp.transpose(w, (0, 2, 3, 1)).reshape(Co, 9 * Ci)
    cb = b.reshape(Co, 1)

    # Flatten spatial onto the lane axis (contiguous -> free reshape, no HBM pass).
    x2d = x_nchw.reshape(N, Ci, H * W)

    out2d = pl.pallas_call(
        functools.partial(_binconv2d2_kernel, H=H, W=W),
        out_shape=jax.ShapeDtypeStruct((N, Co, H * W), jnp.float32),
        grid_spec=pltpu.PrefetchScalarGridSpec(
            num_scalar_prefetch=0,
            grid=(N,),
            in_specs=[
                pl.BlockSpec((1, Ci, H * W), lambda n: (n, 0, 0)),
                pl.BlockSpec((Co, 9 * Ci), lambda n: (0, 0)),
                pl.BlockSpec((Ci, 2), lambda n: (0, 0)),
                pl.BlockSpec((Co, 1), lambda n: (0, 0)),
            ],
            out_specs=pl.BlockSpec((1, Co, H * W), lambda n: (n, 0, 0)),
            scratch_shapes=[pltpu.VMEM((Ci, H + 3, W + 2), jnp.float32)],
        ),
        compiler_params=pltpu.CompilerParams(
            dimension_semantics=("parallel",),
            vmem_limit_bytes=32 * 1024 * 1024),
    )(x2d, wk, bnp, cb)

    return out2d.reshape(N, Co, H, W)


def binconv2d2_reference(x_nchw, params, eps=1e-4):
    """Pure-JAX NCHW reference matching the PyTorch module (eval-mode BN)."""
    w, b, gamma, beta, rm, rv = params
    s = gamma / jnp.sqrt(rv + eps)
    bn_bias = beta - rm * s
    xb = x_nchw * s[None, :, None, None] + bn_bias[None, :, None, None]

    xq = (xb + 1.0) / 2.0
    xq = jnp.round(xq * 3.0) / 3.0
    xq = (xq - 0.5) * 2.0

    y = lax.conv_general_dilated(
        xq, w, window_strides=(1, 1), padding=((1, 1), (1, 1)),
        dimension_numbers=('NCHW', 'OIHW', 'NCHW'))
    return y + b[None, :, None, None]


def make_params(key, in_ch, out_ch):
    ks = jax.random.split(key, 6)
    w = 0.1 * jax.random.normal(ks[0], (out_ch, in_ch, 3, 3), jnp.float32)
    b = 0.05 * jax.random.normal(ks[1], (out_ch,), jnp.float32)
    gamma = 1.0 + 0.1 * jax.random.normal(ks[2], (in_ch,), jnp.float32)
    beta = 0.05 * jax.random.normal(ks[3], (in_ch,), jnp.float32)
    rm = 0.05 * jax.random.normal(ks[4], (in_ch,), jnp.float32)
    rv = 1.0 + 0.1 * jax.random.uniform(ks[5], (in_ch,), jnp.float32)
    return (w, b, gamma, beta, rm, rv)


if __name__ == "__main__":
    N, Ci, Co, H, W = 2, 4, 8, 16, 16   # BinConv2d2(4, 8, 3, stride=1, padding=1)
    key = jax.random.PRNGKey(0)
    kx, kp = jax.random.split(key)
    x = jax.random.normal(kx, (N, Ci, H, W), jnp.float32)
    params = make_params(kp, Ci, Co)

    out = binconv2d2_forward(x, params)
    out = jax.block_until_ready(out)

    ref = binconv2d2_reference(x, params)
    ref = jax.block_until_ready(ref)

    assert out.shape == (N, Co, H, W)
    max_err = jnp.max(jnp.abs(out - ref))
    assert jnp.allclose(out, ref, atol=1e-4, rtol=1e-4), f"max abs err {max_err}"
    print("KERNEL_OK")
</pallas_src>

<mosaic_0001>
module attributes {stable_mosaic.version = 11 : i64} {
  func.func @_binconv2d2_kernel(%arg0: i32, %arg1: memref<1x4x256xf32, #tpu.memory_space<vmem>>, %arg2: memref<8x36xf32, #tpu.memory_space<vmem>>, %arg3: memref<4x2xf32, #tpu.memory_space<vmem>>, %arg4: memref<8x1xf32, #tpu.memory_space<vmem>>, %arg5: memref<1x8x256xf32, #tpu.memory_space<vmem>>, %arg6: memref<4x19x18xf32, #tpu.memory_space<vmem>>) attributes {dimension_semantics = [#tpu.dimension_semantics<parallel>], iteration_bounds = array<i64: 2>, scalar_prefetch = 0 : i64, scratch_operands = 1 : i64, tpu.core_type = #tpu.core_type<tc>, window_params = [{transform_indices = @transform_0, window_bounds = array<i64: 1, 4, 256>}, {pipeline_mode = #tpu.pipeline_mode<synchronous>, transform_indices = @transform_1, window_bounds = array<i64: 8, 36>}, {pipeline_mode = #tpu.pipeline_mode<synchronous>, transform_indices = @transform_2, window_bounds = array<i64: 4, 2>}, {pipeline_mode = #tpu.pipeline_mode<synchronous>, transform_indices = @transform_3, window_bounds = array<i64: 8, 1>}, {transform_indices = @transform_4, window_bounds = array<i64: 1, 8, 256>}]} {
    %c0 = arith.constant 0 : index
    %c0_0 = arith.constant 0 : index
    %c0_1 = arith.constant 0 : index
    %0 = vector.load %arg1[%c0, %c0_0, %c0_1] : memref<1x4x256xf32, #tpu.memory_space<vmem>>, vector<1x4x256xf32>
    %1 = vector.shape_cast %0 : vector<1x4x256xf32> to vector<4x256xf32>
    %c0_2 = arith.constant 0 : index
    %c0_3 = arith.constant 0 : index
    %2 = vector.load %arg3[%c0_2, %c0_3] : memref<4x2xf32, #tpu.memory_space<vmem>>, vector<4x1xf32>
    %c0_4 = arith.constant 0 : index
    %c1 = arith.constant 1 : index
    %3 = vector.load %arg3[%c0_4, %c1] : memref<4x2xf32, #tpu.memory_space<vmem>>, vector<4x1xf32>
    %4 = vector.broadcast %2 : vector<4x1xf32> to vector<4x256xf32>
    %5 = arith.mulf %1, %4 : vector<4x256xf32>
    %6 = vector.broadcast %3 : vector<4x1xf32> to vector<4x256xf32>
    %7 = arith.addf %5, %6 : vector<4x256xf32>
    %cst = arith.constant 1.000000e+00 : f32
    %8 = vector.broadcast %cst : f32 to vector<4x256xf32>
    %9 = arith.addf %7, %8 : vector<4x256xf32>
    %cst_5 = arith.constant 2.000000e+00 : f32
    %10 = vector.broadcast %cst_5 : f32 to vector<4x256xf32>
    %11 = arith.divf %9, %10 : vector<4x256xf32>
    %cst_6 = arith.constant 3.000000e+00 : f32
    %12 = vector.broadcast %cst_6 : f32 to vector<4x256xf32>
    %13 = arith.mulf %11, %12 : vector<4x256xf32>
    %14 = math.roundeven %13 : vector<4x256xf32>
    %cst_7 = arith.constant 3.000000e+00 : f32
    %15 = vector.broadcast %cst_7 : f32 to vector<4x256xf32>
    %16 = arith.divf %14, %15 : vector<4x256xf32>
    %cst_8 = arith.constant 5.000000e-01 : f32
    %17 = vector.broadcast %cst_8 : f32 to vector<4x256xf32>
    %18 = arith.subf %16, %17 : vector<4x256xf32>
    %cst_9 = arith.constant 2.000000e+00 : f32
    %19 = vector.broadcast %cst_9 : f32 to vector<4x256xf32>
    %20 = arith.mulf %18, %19 : vector<4x256xf32>
    %cst_10 = arith.constant 0.000000e+00 : f32
    %21 = vector.broadcast %cst_10 : f32 to vector<4x1x18xf32>
    %c0_11 = arith.constant 0 : index
    %c0_12 = arith.constant 0 : index
    %c0_13 = arith.constant 0 : index
    %22 = vector.load %arg6[%c0_11, %c0_12, %c0_13] : memref<4x19x18xf32, #tpu.memory_space<vmem>>, vector<4x1x18xf32>
    tpu.vector_store %arg6[%c0_11, %c0_12, %c0_13], %21 {strides = array<i32>} : memref<4x19x18xf32, #tpu.memory_space<vmem>>, vector<4x1x18xf32>,
    %cst_14 = arith.constant 0.000000e+00 : f32
    %23 = vector.broadcast %cst_14 : f32 to vector<4x2x18xf32>
    %c0_15 = arith.constant 0 : index
    %c17 = arith.constant 17 : index
    %c0_16 = arith.constant 0 : index
    %24 = vector.load %arg6[%c0_15, %c17, %c0_16] : memref<4x19x18xf32, #tpu.memory_space<vmem>>, vector<4x2x18xf32>
    tpu.vector_store %arg6[%c0_15, %c17, %c0_16], %23 {strides = array<i32>} : memref<4x19x18xf32, #tpu.memory_space<vmem>>, vector<4x2x18xf32>,
    %cst_17 = arith.constant 0.000000e+00 : f32
    %25 = vector.broadcast %cst_17 : f32 to vector<4x16x1xf32>
    %c0_18 = arith.constant 0 : index
    %c1_19 = arith.constant 1 : index
    %c0_20 = arith.constant 0 : index
    %26 = vector.load %arg6[%c0_18, %c1_19, %c0_20] : memref<4x19x18xf32, #tpu.memory_space<vmem>>, vector<4x16x1xf32>
    tpu.vector_store %arg6[%c0_18, %c1_19, %c0_20], %25 {strides = array<i32>} : memref<4x19x18xf32, #tpu.memory_space<vmem>>, vector<4x16x1xf32>,
    %c0_21 = arith.constant 0 : index
    %c1_22 = arith.constant 1 : index
    %c17_23 = arith.constant 17 : index
    %27 = vector.load %arg6[%c0_21, %c1_22, %c17_23] : memref<4x19x18xf32, #tpu.memory_space<vmem>>, vector<4x16x1xf32>
    tpu.vector_store %arg6[%c0_21, %c1_22, %c17_23], %25 {strides = array<i32>} : memref<4x19x18xf32, #tpu.memory_space<vmem>>, vector<4x16x1xf32>,
    %28 = vector.shape_cast %20 : vector<4x256xf32> to vector<4x16x16xf32>
    %c0_24 = arith.constant 0 : index
    %c1_25 = arith.constant 1 : index
    %c1_26 = arith.constant 1 : index
    %29 = vector.load %arg6[%c0_24, %c1_25, %c1_26] : memref<4x19x18xf32, #tpu.memory_space<vmem>>, vector<4x16x16xf32>
    tpu.vector_store %arg6[%c0_24, %c1_25, %c1_26], %28 {strides = array<i32>} : memref<4x19x18xf32, #tpu.memory_space<vmem>>, vector<4x16x16xf32>,
    %c0_27 = arith.constant 0 : index
    %c0_28 = arith.constant 0 : index
    %c0_29 = arith.constant 0 : index
    %30 = vector.load %arg6[%c0_27, %c0_28, %c0_29] : memref<4x19x18xf32, #tpu.memory_space<vmem>>, vector<4x19x18xf32>
    %31 = vector.shape_cast %30 : vector<4x19x18xf32> to vector<4x342xf32>
    %32 = vector.extract_strided_slice %31 {offsets = [0, 0], sizes = [4, 288], strides = [1, 1]} : vector<4x342xf32> to vector<4x288xf32>
    %33 = vector.extract_strided_slice %31 {offsets = [0, 1], sizes = [4, 288], strides = [1, 1]} : vector<4x342xf32> to vector<4x288xf32>
    %34 = vector.extract_strided_slice %31 {offsets = [0, 2], sizes = [4, 288], strides = [1, 1]} : vector<4x342xf32> to vector<4x288xf32>
    %35 = vector.extract_strided_slice %31 {offsets = [0, 18], sizes = [4, 288], strides = [1, 1]} : vector<4x342xf32> to vector<4x288xf32>
    %36 = vector.extract_strided_slice %31 {offsets = [0, 19], sizes = [4, 288], strides = [1, 1]} : vector<4x342xf32> to vector<4x288xf32>
    %37 = vector.extract_strided_slice %31 {offsets = [0, 20], sizes = [4, 288], strides = [1, 1]} : vector<4x342xf32> to vector<4x288xf32>
    %38 = vector.extract_strided_slice %31 {offsets = [0, 36], sizes = [4, 288], strides = [1, 1]} : vector<4x342xf32> to vector<4x288xf32>
    %39 = vector.extract_strided_slice %31 {offsets = [0, 37], sizes = [4, 288], strides = [1, 1]} : vector<4x342xf32> to vector<4x288xf32>
    %40 = vector.extract_strided_slice %31 {offsets = [0, 38], sizes = [4, 288], strides = [1, 1]} : vector<4x342xf32> to vector<4x288xf32>
    %41 = tpu.concatenate %32, %33, %34, %35, %36, %37, %38, %39, %40 in 0 : vector<4x288xf32>, vector<4x288xf32>, vector<4x288xf32>, vector<4x288xf32>, vector<4x288xf32>, vector<4x288xf32>, vector<4x288xf32>, vector<4x288xf32>, vector<4x288xf32> -> vector<36x288xf32>
    %c0_30 = arith.constant 0 : index
    %c0_31 = arith.constant 0 : index
    %42 = vector.load %arg2[%c0_30, %c0_31] : memref<8x36xf32, #tpu.memory_space<vmem>>, vector<8x36xf32>
    %cst_32 = arith.constant dense<0.000000e+00> : vector<8x288xf32>
    %43 = tpu.matmul %42, %41, %cst_32 {dimension_numbers = #tpu.dot_dimension_numbers<[1], [0], [0], [1], [0, 0, 1, 1], [], []>} : vector<8x36xf32>, vector<36x288xf32>, vector<8x288xf32> -> vector<8x288xf32>
    %c0_33 = arith.constant 0 : index
    %c0_34 = arith.constant 0 : index
    %44 = vector.load %arg4[%c0_33, %c0_34] : memref<8x1xf32, #tpu.memory_space<vmem>>, vector<8x1xf32>
    %45 = vector.broadcast %44 : vector<8x1xf32> to vector<8x288xf32>
    %46 = arith.addf %43, %45 : vector<8x288xf32>
    %47 = vector.shape_cast %46 : vector<8x288xf32> to vector<8x16x18xf32>
    %48 = vector.extract_strided_slice %47 {offsets = [0, 0, 0], sizes = [8, 16, 16], strides = [1, 1, 1]} : vector<8x16x18xf32> to vector<8x16x16xf32>
    %49 = vector.shape_cast %48 : vector<8x16x16xf32> to vector<8x256xf32>
    %c0_35 = arith.constant 0 : index
    %c0_36 = arith.constant 0 : index
    %c0_37 = arith.constant 0 : index
    %50 = vector.load %arg5[%c0_35, %c0_36, %c0_37] : memref<1x8x256xf32, #tpu.memory_space<vmem>>, vector<1x8x256xf32>
    %51 = vector.shape_cast %50 : vector<1x8x256xf32> to vector<8x256xf32>
    %52 = vector.shape_cast %49 : vector<8x256xf32> to vector<1x8x256xf32>
    tpu.vector_store %arg5[%c0_35, %c0_36, %c0_37], %52 {strides = array<i32>} : memref<1x8x256xf32, #tpu.memory_space<vmem>>, vector<1x8x256xf32>,
    return
  }
  func.func @transform_0(%arg0: i32) -> (i32, i32, i32) {
    %c0_i32 = arith.constant 0 : i32
    %c0_i32_0 = arith.constant 0 : i32
    %c0_i32_1 = arith.constant 0 : i32
    return %arg0, %c0_i32, %c0_i32_0 : i32, i32, i32
  }
  func.func @transform_1(%arg0: i32) -> (i32, i32) {
    %c0_i32 = arith.constant 0 : i32
    %c0_i32_0 = arith.constant 0 : i32
    %c0_i32_1 = arith.constant 0 : i32
    return %c0_i32, %c0_i32_0 : i32, i32
  }
  func.func @transform_2(%arg0: i32) -> (i32, i32) {
    %c0_i32 = arith.constant 0 : i32
    %c0_i32_0 = arith.constant 0 : i32
    %c0_i32_1 = arith.constant 0 : i32
    return %c0_i32, %c0_i32_0 : i32, i32
  }
  func.func @transform_3(%arg0: i32) -> (i32, i32) {
    %c0_i32 = arith.constant 0 : i32
    %c0_i32_0 = arith.constant 0 : i32
    %c0_i32_1 = arith.constant 0 : i32
    return %c0_i32, %c0_i32_0 : i32, i32
  }
  func.func @transform_4(%arg0: i32) -> (i32, i32, i32) {
    %c0_i32 = arith.constant 0 : i32
    %c0_i32_0 = arith.constant 0 : i32
    %c0_i32_1 = arith.constant 0 : i32
    return %arg0, %c0_i32, %c0_i32_0 : i32, i32, i32
  }
}

</mosaic_0001>

<llo_original>
// kernel: tpu_custom_call.1
$region0: #{tpu_custom_call.1}
  #allocation0 [shape = 'u32[]', space=smem, size = 0x4, offset = 0x4, fixed_abs, tag = 'smem constant byte address 0x4 - core index']
  #allocation1 [shape = 'u32[144,128]{1,0:T(1,128)}', space=vmem, size = 0x12000, scoped, tag = 'internal scratch']
  #allocation2 [shape = 'f32[4,19,18]{2,1,0:T(8,128)}', space=vmem, size = 0xc000, scoped, tag = 'scratch operand']
  %s0 = inlined_call_operand.hbm [shape: f32[2,4,256], index: 0, kind: input, shape index: {}]
  %s1 = inlined_call_operand.vmem [shape: f32[8,36], index: 1, kind: input, shape index: {}]
  %s2 = inlined_call_operand.vmem [shape: f32[4,2], index: 2, kind: input, shape index: {}]
  %s3 = inlined_call_operand.vmem [shape: f32[8,1], index: 3, kind: input, shape index: {}]
  %s4 = inlined_call_operand.hbm [shape: f32[2,8,256], index: 4, kind: output, shape index: {}]
  %s5 = sld [smem:[#allocation0]]
  $region53: #{tpu_custom_call.1} parent=0
    _
  %s7 = ssub.s32 1, %s5
  %s8 = scalar_select 0, %s7, %s5
  $region1: #{tpu_custom_call.1} parent=0
    #allocation3 [shape = 'u8[8192]{0}', space=vmem, size = 0x2000, scoped, tag = 'input window, operand 0']
    #allocation4 [shape = 's32[2]{0}', space=sflag, size = 0x8, scoped, tag = 'scoped memory for tpu_custom_call.1']
    #allocation5 [shape = 's32[2]{0}', space=sflag, size = 0x8, scoped, tag = 'scoped memory for tpu_custom_call.1']
    #allocation6 [shape = 'u8[16384]{0}', space=vmem, size = 0x4000, scoped, tag = 'output window, operand 0']
    %9 = vsyncpa [#allocation4], 0
    %s10 = scalar_lea.sflag [#allocation4], 1
    %11 = vsyncpa %s10, 0
    %12 = vsyncpa [#allocation5], 0
    %s13 = scalar_lea.sflag [#allocation5], 1
    %14 = vsyncpa %s13, 0
    loop: start=0, step=1, limit=4
    $region2: #{tpu_custom_call.1} parent=1 // loop_pre_header
      _
    $region3: #{tpu_custom_call.1} parent=1 // loop_header
      %s16 = sphi 0, %s20
      %p17 = scmp.ge.s32.totalorder %s16, 4
      %s26 = sphi 0, %s28
      %s29 = sphi 0, %s26
      %s30 = sphi 0, %s29
      %s46 = sphi 0, %s30
      %s50 = sphi 0, %s50
      %s52 = sphi 0, %s50
      %s53 = sphi 0, %s52
      %s67 = sphi 0, %s53
      %s71 = sphi 0, %s71
      %s73 = sphi 0, %s71
      %s74 = sphi 0, %s73
      %s88 = sphi 0, %s74
      %s92 = sphi 0, %s92
      %s94 = sphi 0, %s92
      %s95 = sphi 0, %s94
      %s109 = sphi 0, %s95
      %s115 = sphi 0, %s117
      %s118 = sphi 0, %s115
      %s119 = sphi 0, %s118
      %s135 = sphi 0, %s119
    $region4: #{tpu_custom_call.1} parent=1 // loop_header_branch
      %19 = sbr.rel (%p17) target = $region8
    $region5: #{tpu_custom_call.1} parent=1 // loop_body
      %s21 = ssub.s32 %s16, 1
      %s22 = ssub.s32 %s16, 2
      %s23 = sadd.s32 %s16, 1
      %s24 = ssub.s32 %s16, %s23
      %p25 = scmp.eq.s32.totalorder %s24, 0
      %s27 = sadd.s32 %s26, 1
      %s28 = scalar_select %p25, %s26, %s27
      %p31 = pneg %p25
      %p32 = scmp.eq.s32.totalorder %s16, 1
      %p33 = por %p31, %p32
      %p34 = scmp.ne.s32.totalorder %s26, %s29
      %p35 = scmp.eq.s32.totalorder %s16, 0
      %p36 = por %p34, %p35
      %p37 = scmp.ne.s32.totalorder %s26, %s29
      %p38 = scmp.eq.s32.totalorder %s21, 1
      %p39 = por %p37, %p38
      %p40 = scmp.ne.s32.totalorder %s29, %s30
      %p41 = scmp.eq.s32.totalorder %s21, 0
      %p42 = por %p40, %p41
      %p43 = scmp.ne.s32.totalorder %s29, %s30
      %p44 = scmp.eq.s32.totalorder %s22, 1
      %p45 = por %p43, %p44
      %p47 = scmp.ne.s32.totalorder %s30, %s46
      %p48 = scmp.eq.s32.totalorder %s22, 0
      %p49 = por %p47, %p48
      %s51 = sadd.s32 %s50, 1
      %p54 = scmp.eq.s32.totalorder %s16, 1
      %p55 = scmp.ne.s32.totalorder %s50, %s52
      %p56 = scmp.eq.s32.totalorder %s16, 0
      %p57 = por %p55, %p56
      %p58 = scmp.ne.s32.totalorder %s50, %s52
      %p59 = scmp.eq.s32.totalorder %s21, 1
      %p60 = por %p58, %p59
      %p61 = scmp.ne.s32.totalorder %s52, %s53
      %p62 = scmp.eq.s32.totalorder %s21, 0
      %p63 = por %p61, %p62
      %p64 = scmp.ne.s32.totalorder %s52, %s53
      %p65 = scmp.eq.s32.totalorder %s22, 1
      %p66 = por %p64, %p65
      %p68 = scmp.ne.s32.totalorder %s53, %s67
      %p69 = scmp.eq.s32.totalorder %s22, 0
      %p70 = por %p68, %p69
      %s72 = sadd.s32 %s71, 1
      %p75 = scmp.eq.s32.totalorder %s16, 1
      %p76 = scmp.ne.s32.totalorder %s71, %s73
      %p77 = scmp.eq.s32.totalorder %s16, 0
      %p78 = por %p76, %p77
      %p79 = scmp.ne.s32.totalorder %s71, %s73
      %p80 = scmp.eq.s32.totalorder %s21, 1
      %p81 = por %p79, %p80
      %p82 = scmp.ne.s32.totalorder %s73, %s74
      %p83 = scmp.eq.s32.totalorder %s21, 0
      %p84 = por %p82, %p83
      %p85 = scmp.ne.s32.totalorder %s73, %s74
      %p86 = scmp.eq.s32.totalorder %s22, 1
      %p87 = por %p85, %p86
      %p89 = scmp.ne.s32.totalorder %s74, %s88
      %p90 = scmp.eq.s32.totalorder %s22, 0
      %p91 = por %p89, %p90
      %s93 = sadd.s32 %s92, 1
      %p96 = scmp.eq.s32.totalorder %s16, 1
      %p97 = scmp.ne.s32.totalorder %s92, %s94
      %p98 = scmp.eq.s32.totalorder %s16, 0
      %p99 = por %p97, %p98
      %p100 = scmp.ne.s32.totalorder %s92, %s94
      %p101 = scmp.eq.s32.totalorder %s21, 1
      %p102 = por %p100, %p101
      %p103 = scmp.ne.s32.totalorder %s94, %s95
      %p104 = scmp.eq.s32.totalorder %s21, 0
      %p105 = por %p103, %p104
      %p106 = scmp.ne.s32.totalorder %s94, %s95
      %p107 = scmp.eq.s32.totalorder %s22, 1
      %p108 = por %p106, %p107
      %p110 = scmp.ne.s32.totalorder %s95, %s109
      %p111 = scmp.eq.s32.totalorder %s22, 0
      %p112 = por %p110, %p111
      %s113 = ssub.s32 %s16, %s23
      %p114 = scmp.eq.s32.totalorder %s113, 0
      %s116 = sadd.s32 %s115, 1
      %s117 = scalar_select %p114, %s115, %s116
      %p120 = pneg %p114
      %p121 = scmp.eq.s32.totalorder %s16, 1
      %p122 = por %p120, %p121
      %p123 = scmp.ne.s32.totalorder %s115, %s118
      %p124 = scmp.eq.s32.totalorder %s16, 0
      %p125 = por %p123, %p124
      %p126 = scmp.ne.s32.totalorder %s115, %s118
      %p127 = scmp.eq.s32.totalorder %s21, 1
      %p128 = por %p126, %p127
      %p129 = scmp.ne.s32.totalorder %s118, %s119
      %p130 = scmp.eq.s32.totalorder %s21, 0
      %p131 = por %p129, %p130
      %p132 = scmp.ne.s32.totalorder %s118, %s119
      %p133 = scmp.eq.s32.totalorder %s22, 1
      %p134 = por %p132, %p133
      %p136 = scmp.ne.s32.totalorder %s119, %s135
      %p137 = scmp.eq.s32.totalorder %s22, 0
      %p138 = por %p136, %p137
      %p139 = scmp.le.s32.totalorder 1, %s16
      %p140 = scmp.lt.s32.totalorder %s16, 3
      %p141 = pnand %p139, %p140
      %p142 = pneg %p141
      // Predicated region
      $region9: #{tpu_custom_call.1} parent=5 // pred_check
        _
      $region10: #{tpu_custom_call.1} parent=5 // pred_check_branch
        %144 = sbr.rel (%p141) target = $region12
      $region11: #{tpu_custom_call.1} parent=5 // pred_region
        %s145 = ssub.s32 %s16, 1
        // Predicated region
        $region13: #{tpu_custom_call.1} parent=11 // pred_check
          %p146 = pneg %p63
        $region14: #{tpu_custom_call.1} parent=11 // pred_check_branch
          %148 = sbr.rel (%p146) target = $region16
        $region15: #{tpu_custom_call.1} parent=11 // pred_region
          _
        $region16: #{tpu_custom_call.1} parent=11 // pred_fallthru
          _
        // Predicated region
        $region17: #{tpu_custom_call.1} parent=11 // pred_check
          %p149 = pneg %p84
        $region18: #{tpu_custom_call.1} parent=11 // pred_check_branch
          %151 = sbr.rel (%p149) target = $region20
        $region19: #{tpu_custom_call.1} parent=11 // pred_region
          _
        $region20: #{tpu_custom_call.1} parent=11 // pred_fallthru
          _
        // Predicated region
        $region21: #{tpu_custom_call.1} parent=11 // pred_check
          %p152 = pneg %p105
        $region22: #{tpu_custom_call.1} parent=11 // pred_check_branch
          %154 = sbr.rel (%p152) target = $region24
        $region23: #{tpu_custom_call.1} parent=11 // pred_region
          _
        $region24: #{tpu_custom_call.1} parent=11 // pred_fallthru
          _
      $region12: #{tpu_custom_call.1} parent=5 // pred_fallthru
        _
      %p155 = scmp.lt.s32.totalorder %s16, 2
      // Predicated region
      $region25: #{tpu_custom_call.1} parent=5 // pred_check
        %p156 = pneg %p155
      $region26: #{tpu_custom_call.1} parent=5 // pred_check_branch
        %158 = sbr.rel (%p156) target = $region28
      $region27: #{tpu_custom_call.1} parent=5 // pred_region
        // Predicated region
        $region29: #{tpu_custom_call.1} parent=27 // pred_check
          %p159 = pneg %p36
        $region30: #{tpu_custom_call.1} parent=27 // pred_check_branch
          %161 = sbr.rel (%p159) target = $region32
        $region31: #{tpu_custom_call.1} parent=27 // pred_region
          %s162 = sand.u32 %s26, 1
          %s163 = scalar_lea.sflag [#allocation4], %s162
          %s164 = sand.u32 %s26, 1
          %s165 = smul.addr %s164, 8
          %s166 = scalar_lea.vmem [#allocation3], %s165
          %s168 = ssub.s32 128, 128
          %169 = vsyncadd %s163, %s168
          %s170 = smul.addr %s16, 2
          %s171 = smul.addr %s170, 64
          %s172 = scalar_lea.hbm %s0, %s171
          %s174 = sshll.u32 %s166, 4
          %s175 = int_to_ptr.vmem [resolvable:$true] %s174
          %177 = dma.hbm_to_vmem [thread:$0]  %s172, 128, %s175, %s163
        $region32: #{tpu_custom_call.1} parent=27 // pred_fallthru
          _
      $region28: #{tpu_custom_call.1} parent=5 // pred_fallthru
        _
      %p178 = scmp.le.s32.totalorder 1, %s16
      %p179 = scmp.lt.s32.totalorder %s16, 3
      %p180 = pnand %p178, %p179
      %p181 = pneg %p180
      // Predicated region
      $region33: #{tpu_custom_call.1} parent=5 // pred_check
        _
      $region34: #{tpu_custom_call.1} parent=5 // pred_check_branch
        %183 = sbr.rel (%p180) target = $region36
      $region35: #{tpu_custom_call.1} parent=5 // pred_region
        %s184 = ssub.s32 %s16, 1
        %s185 = sand.u32 %s29, 1
        %s186 = scalar_lea.sflag [#allocation4], %s185
        %s187 = sand.u32 %s29, 1
        %s188 = smul.addr %s187, 8
        %s189 = scalar_lea.vmem [#allocation3], %s188
        // Predicated region
        $region37: #{tpu_custom_call.1} parent=35 // pred_check
          %p190 = pneg %p42
        $region38: #{tpu_custom_call.1} parent=35 // pred_check_branch
          %192 = sbr.rel (%p190) target = $region40
        $region39: #{tpu_custom_call.1} parent=35 // pred_region
          %193 = dma.done %s186, 128
        $region40: #{tpu_custom_call.1} parent=35 // pred_fallthru
          _
        %s194 = sand.u32 %s29, 1
        %s195 = scalar_lea.sflag [#allocation4], %s194
        %s196 = sand.u32 %s29, 1
        %s197 = smul.addr %s196, 8
        %s198 = scalar_lea.vmem [#allocation3], %s197
        %p199 = pneg %p42
        %p200 = pneg %p39
        %p201 = pneg %p63
        %p202 = pneg %p60
        %p203 = pneg %p84
        %p204 = pneg %p81
        %p205 = pneg %p105
        %p206 = pneg %p102
        %p207 = pneg %p131
        %p208 = pneg %p128
        %s209 = sand.u32 %s118, 1
        %s210 = scalar_lea.sflag [#allocation5], %s209
        %s211 = sand.u32 %s118, 1
        %s212 = smul.addr %s211, 16
        %s213 = scalar_lea.vmem [#allocation6], %s212
        %v214 = vld [vmem:[%s189] sm:$0xff]
        %v215 = vld [vmem:[%s2] sm:$0xf]
        %217 = vset.pattern.permute.xlu0 0
        %218 = vperm.xlu0 %217, %v215
        %v219 = vpop.permute.xlu0 %218
        %v221 = vunpack.c.l.s4 839922192
        %v222 = vunpack.c.0.s8 %v221
        %v223 = vlaneseq
        %v224 = vshrl.u32 %v223, 7
        %v225 = vsub.s32 %v222, %v224
        %v226 = vrot.slane %v219, %v225
        %v228 = vmul.f32 %v214, %v226
        %229 = vset.pattern.permute.xlu0 1
        %230 = vperm.xlu0 %229, %v215
        %v231 = vpop.permute.xlu0 %230
        %v233 = vunpack.c.l.s4 839922192
        %v234 = vunpack.c.0.s8 %v233
        %v235 = vlaneseq
        %v236 = vshrl.u32 %v235, 7
        %v237 = vsub.s32 %v234, %v236
        %v238 = vrot.slane %v231, %v237
        %v240 = vadd.f32 %v228, %v238
        %v241 = vadd.f32 %v240, 1.0
        %v242 = vrcp.pop 2.0
        %v243 = vmul.f32 %v241, %v242
        %v244 = vmul.f32 %v243, 3.0
        %v245 = vround.ne.pseudo %v244
        %v246 = vrcp.pop 3.0
        %v247 = vmul.f32 %v245, %v246
        %v248 = vsub.f32 %v247, 0.5
        %v249 = vmul.f32 %v248, 2.0
        %vm250 = vcmask 139264
        %251 = vst.msk [vmem:[#allocation2] sm:$0x1] %vm250, 0.0
        %252 = vst.msk [vmem:[#allocation2 + $0x18] sm:$0x1] %vm250, 0.0
        %253 = vst.msk [vmem:[#allocation2 + $0x30] sm:$0x1] %vm250, 0.0
        %254 = vst.msk [vmem:[#allocation2 + $0x48] sm:$0x1] %vm250, 0.0
        %vm255 = vcmask 140288
        %256 = vst.msk [vmem:[#allocation2 + $0x11] sm:$0x3] %vm255, 0.0
        %257 = vst.msk [vmem:[#allocation2 + $0x29] sm:$0x3] %vm255, 0.0
        %258 = vst.msk [vmem:[#allocation2 + $0x41] sm:$0x3] %vm255, 0.0
        %259 = vst.msk [vmem:[#allocation2 + $0x59] sm:$0x3] %vm255, 0.0
        %vm260 = vcmask 7168
        %261 = vst.msk [vmem:[#allocation2 + $0x1] sm:$0xff] %vm260, 0.0
        %262 = vst.msk [vmem:[#allocation2 + $0x9] sm:$0xff] %vm260, 0.0
        %263 = vst.msk [vmem:[#allocation2 + $0x19] sm:$0xff] %vm260, 0.0
        %264 = vst.msk [vmem:[#allocation2 + $0x21] sm:$0xff] %vm260, 0.0
        %265 = vst.msk [vmem:[#allocation2 + $0x31] sm:$0xff] %vm260, 0.0
        %266 = vst.msk [vmem:[#allocation2 + $0x39] sm:$0xff] %vm260, 0.0
        %267 = vst.msk [vmem:[#allocation2 + $0x49] sm:$0xff] %vm260, 0.0
        %268 = vst.msk [vmem:[#allocation2 + $0x51] sm:$0xff] %vm260, 0.0
        %vm269 = vcmask 146568
        %270 = vst.msk [vmem:[#allocation2 + $0x1] sm:$0xff] %vm269, 0.0
        %271 = vst.msk [vmem:[#allocation2 + $0x9] sm:$0xff] %vm269, 0.0
        %272 = vst.msk [vmem:[#allocation2 + $0x19] sm:$0xff] %vm269, 0.0
        %273 = vst.msk [vmem:[#allocation2 + $0x21] sm:$0xff] %vm269, 0.0
        %274 = vst.msk [vmem:[#allocation2 + $0x31] sm:$0xff] %vm269, 0.0
        %275 = vst.msk [vmem:[#allocation2 + $0x39] sm:$0xff] %vm269, 0.0
        %276 = vst.msk [vmem:[#allocation2 + $0x49] sm:$0xff] %vm269, 0.0
        %277 = vst.msk [vmem:[#allocation2 + $0x51] sm:$0xff] %vm269, 0.0
        %v279 = vrot.slane %v249, 4
        %281 = vrot.lane.b32.xlu0 %v249, 112
        %v282 = vpop.permute.xlu0 %281
        %v283 = vrot.slane %v282, 4
        %285 = vrot.lane.b32.xlu0 %v249, 96
        %v286 = vpop.permute.xlu0 %285
        %v287 = vrot.slane %v286, 4
        %289 = vrot.lane.b32.xlu0 %v249, 80
        %v290 = vpop.permute.xlu0 %289
        %v291 = vrot.slane %v290, 4
        %293 = vrot.lane.b32.xlu0 %v249, 64
        %v294 = vpop.permute.xlu0 %293
        %v295 = vrot.slane %v294, 4
        %297 = vrot.lane.b32.xlu0 %v249, 48
        %v298 = vpop.permute.xlu0 %297
        %v299 = vrot.slane %v298, 4
        %301 = vrot.lane.b32.xlu0 %v249, 32
        %v302 = vpop.permute.xlu0 %301
        %v303 = vrot.slane %v302, 4
        %305 = vrot.lane.b32.xlu0 %v249, 16
        %v306 = vpop.permute.xlu0 %305
        %v307 = vrot.slane %v306, 4
        %v316 = vcombine.low %v249, %v286
        %v318 = vunpack.c.l.s4 1983009808
        %v319 = vunpack.c.0.s8 %v318
        %v320 = vlaneseq
        %v321 = vshrl.u32 %v320, 7
        %v322 = vsub.s32 %v319, %v321
        %v323 = vrot.slane %v316, %v322
        %v324 = vcombine.low %v282, %v290
        %v326 = vunpack.c.l.s4 1983009808
        %v327 = vunpack.c.0.s8 %v326
        %v328 = vlaneseq
        %v329 = vshrl.u32 %v328, 7
        %v330 = vsub.s32 %v327, %v329
        %v331 = vrot.slane %v324, %v330
        %v332 = vcombine.low %v323, %v331
        %v333 = vcombine.high %v323, %v331
        %v335 = vunpack.c.l.s4 1934713408
        %v336 = vunpack.c.0.s8 %v335
        %v337 = vlaneseq
        %v338 = vshrl.u32 %v337, 7
        %v339 = vsub.s32 %v336, %v338
        %v340 = vrot.slane %v332, %v339
        %v342 = vunpack.c.l.s4 1934713408
        %v343 = vunpack.c.0.s8 %v342
        %v344 = vlaneseq
        %v345 = vshrl.u32 %v344, 7
        %v346 = vsub.s32 %v343, %v345
        %v347 = vrot.slane %v333, %v346
        %v348 = vcombine.high %v340, 0.0
        %v349 = vcombine.high %v347, 0.0
        %v350 = vcombine.low %v294, %v302
        %v352 = vunpack.c.l.s4 1983009808
        %v353 = vunpack.c.0.s8 %v352
        %v354 = vlaneseq
        %v355 = vshrl.u32 %v354, 7
        %v356 = vsub.s32 %v353, %v355
        %v357 = vrot.slane %v350, %v356
        %v358 = vcombine.low %v298, %v306
        %v360 = vunpack.c.l.s4 1983009808
        %v361 = vunpack.c.0.s8 %v360
        %v362 = vlaneseq
        %v363 = vshrl.u32 %v362, 7
        %v364 = vsub.s32 %v361, %v363
        %v365 = vrot.slane %v358, %v364
        %v366 = vcombine.low %v357, %v365
        %v367 = vcombine.high %v357, %v365
        %v369 = vunpack.c.l.s4 1934713408
        %v370 = vunpack.c.0.s8 %v369
        %v371 = vlaneseq
        %v372 = vshrl.u32 %v371, 7
        %v373 = vsub.s32 %v370, %v372
        %v374 = vrot.slane %v366, %v373
        %v376 = vunpack.c.l.s4 1934713408
        %v377 = vunpack.c.0.s8 %v376
        %v378 = vlaneseq
        %v379 = vshrl.u32 %v378, 7
        %v380 = vsub.s32 %v377, %v379
        %v381 = vrot.slane %v367, %v380
        %v382 = vcombine.high %v374, 0.0
        %v383 = vcombine.high %v381, 0.0
        %v384 = vcombine.low %v279, %v287
        %v386 = vunpack.c.l.s4 1983009808
        %v387 = vunpack.c.0.s8 %v386
        %v388 = vlaneseq
        %v389 = vshrl.u32 %v388, 7
        %v390 = vsub.s32 %v387, %v389
        %v391 = vrot.slane %v384, %v390
        %v392 = vcombine.low %v283, %v291
        %v394 = vunpack.c.l.s4 1983009808
        %v395 = vunpack.c.0.s8 %v394
        %v396 = vlaneseq
        %v397 = vshrl.u32 %v396, 7
        %v398 = vsub.s32 %v395, %v397
        %v399 = vrot.slane %v392, %v398
        %v400 = vcombine.low %v391, %v399
        %v401 = vcombine.high %v391, %v399
        %v403 = vunpack.c.l.s4 1934713408
        %v404 = vunpack.c.0.s8 %v403
        %v405 = vlaneseq
        %v406 = vshrl.u32 %v405, 7
        %v407 = vsub.s32 %v404, %v406
        %v408 = vrot.slane %v400, %v407
        %v410 = vunpack.c.l.s4 1934713408
        %v411 = vunpack.c.0.s8 %v410
        %v412 = vlaneseq
        %v413 = vshrl.u32 %v412, 7
        %v414 = vsub.s32 %v411, %v413
        %v415 = vrot.slane %v401, %v414
        %v416 = vcombine.high %v408, 0.0
        %v417 = vcombine.high %v415, 0.0
        %v418 = vcombine.low %v295, %v303
        %v420 = vunpack.c.l.s4 1983009808
        %v421 = vunpack.c.0.s8 %v420
        %v422 = vlaneseq
        %v423 = vshrl.u32 %v422, 7
        %v424 = vsub.s32 %v421, %v423
        %v425 = vrot.slane %v418, %v424
        %v426 = vcombine.low %v299, %v307
        %v428 = vunpack.c.l.s4 1983009808
        %v429 = vunpack.c.0.s8 %v428
        %v430 = vlaneseq
        %v431 = vshrl.u32 %v430, 7
        %v432 = vsub.s32 %v429, %v431
        %v433 = vrot.slane %v426, %v432
        %v434 = vcombine.low %v425, %v433
        %v435 = vcombine.high %v425, %v433
        %v437 = vunpack.c.l.s4 1934713408
        %v438 = vunpack.c.0.s8 %v437
        %v439 = vlaneseq
        %v440 = vshrl.u32 %v439, 7
        %v441 = vsub.s32 %v438, %v440
        %v442 = vrot.slane %v434, %v441
        %v444 = vunpack.c.l.s4 1934713408
        %v445 = vunpack.c.0.s8 %v444
        %v446 = vlaneseq
        %v447 = vshrl.u32 %v446, 7
        %v448 = vsub.s32 %v445, %v447
        %v449 = vrot.slane %v435, %v448
        %v450 = vcombine.high %v442, 0.0
        %v451 = vcombine.high %v449, 0.0
        %v468 = vcombine.low %v340, %v374
        %v469 = vcombine.low %v408, %v442
        %v470 = vcombine.low %v348, %v382
        %v471 = vcombine.low %v416, %v450
        %v472 = vcombine.low %v347, %v381
        %v473 = vcombine.low %v415, %v449
        %v474 = vcombine.low %v349, %v383
        %v475 = vcombine.low %v417, %v451
        %476 = vrot.lane.b32.xlu0 %v468, 1
        %v477 = vpop.permute.xlu0 %476
        %478 = vrot.lane.b32.xlu0 %v469, 1
        %v479 = vpop.permute.xlu0 %478
        %480 = vrot.lane.b32.xlu0 %v470, 1
        %v481 = vpop.permute.xlu0 %480
        %482 = vrot.lane.b32.xlu0 %v471, 1
        %v483 = vpop.permute.xlu0 %482
        %484 = vrot.lane.b32.xlu0 %v472, 1
        %v485 = vpop.permute.xlu0 %484
        %486 = vrot.lane.b32.xlu0 %v473, 1
        %v487 = vpop.permute.xlu0 %486
        %488 = vrot.lane.b32.xlu0 %v474, 1
        %v489 = vpop.permute.xlu0 %488
        %490 = vrot.lane.b32.xlu0 %v475, 1
        %v491 = vpop.permute.xlu0 %490
        %vm500 = vcmask 138248
        %501 = vst.msk [vmem:[#allocation2 + $0x1] sm:$0xff] %vm500, %v477
        %502 = vst.msk [vmem:[#allocation2 + $0x9] sm:$0xff] %vm500, %v479
        %503 = vst.msk [vmem:[#allocation2 + $0x19] sm:$0xff] %vm500, %v481
        %504 = vst.msk [vmem:[#allocation2 + $0x21] sm:$0xff] %vm500, %v483
        %505 = vst.msk [vmem:[#allocation2 + $0x31] sm:$0xff] %vm500, %v485
        %506 = vst.msk [vmem:[#allocation2 + $0x39] sm:$0xff] %vm500, %v487
        %507 = vst.msk [vmem:[#allocation2 + $0x49] sm:$0xff] %vm500, %v489
        %508 = vst.msk [vmem:[#allocation2 + $0x51] sm:$0xff] %vm500, %v491
        %v509 = vld [vmem:[#allocation2] sm:$0xff]
        %v510 = vld [vmem:[#allocation2 + $0x8] sm:$0xff]
        %v511 = vld [vmem:[#allocation2 + $0x10] sm:$0x7]
        %v512 = vld [vmem:[#allocation2 + $0x18] sm:$0xff]
        %v513 = vld [vmem:[#allocation2 + $0x20] sm:$0xff]
        %v514 = vld [vmem:[#allocation2 + $0x28] sm:$0x7]
        %v515 = vld [vmem:[#allocation2 + $0x30] sm:$0xff]
        %v516 = vld [vmem:[#allocation2 + $0x38] sm:$0xff]
        %v517 = vld [vmem:[#allocation2 + $0x40] sm:$0x7]
        %v518 = vld [vmem:[#allocation2 + $0x48] sm:$0xff]
        %v519 = vld [vmem:[#allocation2 + $0x50] sm:$0xff]
        %v520 = vld [vmem:[#allocation2 + $0x58] sm:$0x7]
        %v521 = vcombine.low %v509, %v515
        %v522 = vcombine.high %v509, %v515
        %v524 = vunpack.c.l.s4 1983009808
        %v525 = vunpack.c.0.s8 %v524
        %v526 = vlaneseq
        %v527 = vshrl.u32 %v526, 7
        %v528 = vsub.s32 %v525, %v527
        %v529 = vrot.slane %v521, %v528
        %v531 = vunpack.c.l.s4 1983009808
        %v532 = vunpack.c.0.s8 %v531
        %v533 = vlaneseq
        %v534 = vshrl.u32 %v533, 7
        %v535 = vsub.s32 %v532, %v534
        %v536 = vrot.slane %v522, %v535
        %v537 = vcombine.low %v512, %v518
        %v538 = vcombine.high %v512, %v518
        %v540 = vunpack.c.l.s4 1983009808
        %v541 = vunpack.c.0.s8 %v540
        %v542 = vlaneseq
        %v543 = vshrl.u32 %v542, 7
        %v544 = vsub.s32 %v541, %v543
        %v545 = vrot.slane %v537, %v544
        %v547 = vunpack.c.l.s4 1983009808
        %v548 = vunpack.c.0.s8 %v547
        %v549 = vlaneseq
        %v550 = vshrl.u32 %v549, 7
        %v551 = vsub.s32 %v548, %v550
        %v552 = vrot.slane %v538, %v551
        %v553 = vcombine.low %v529, %v545
        %v554 = vcombine.high %v529, %v545
        %v556 = vunpack.c.l.s4 1934713408
        %v557 = vunpack.c.0.s8 %v556
        %v558 = vlaneseq
        %v559 = vshrl.u32 %v558, 7
        %v560 = vsub.s32 %v557, %v559
        %v561 = vrot.slane %v553, %v560
        %v563 = vunpack.c.l.s4 1934713408
        %v564 = vunpack.c.0.s8 %v563
        %v565 = vlaneseq
        %v566 = vshrl.u32 %v565, 7
        %v567 = vsub.s32 %v564, %v566
        %v568 = vrot.slane %v554, %v567
        %v569 = vcombine.low %v536, %v552
        %v570 = vcombine.high %v536, %v552
        %v572 = vunpack.c.l.s4 1934713408
        %v573 = vunpack.c.0.s8 %v572
        %v574 = vlaneseq
        %v575 = vshrl.u32 %v574, 7
        %v576 = vsub.s32 %v573, %v575
        %v577 = vrot.slane %v569, %v576
        %v579 = vunpack.c.l.s4 1934713408
        %v580 = vunpack.c.0.s8 %v579
        %v581 = vlaneseq
        %v582 = vshrl.u32 %v581, 7
        %v583 = vsub.s32 %v580, %v582
        %v584 = vrot.slane %v570, %v583
        %v585 = vcombine.high %v561, 0.0
        %v586 = vcombine.high %v568, 0.0
        %v587 = vcombine.high %v577, 0.0
        %v588 = vcombine.high %v584, 0.0
        %v589 = vcombine.low %v510, %v516
        %v590 = vcombine.high %v510, %v516
        %v592 = vunpack.c.l.s4 1983009808
        %v593 = vunpack.c.0.s8 %v592
        %v594 = vlaneseq
        %v595 = vshrl.u32 %v594, 7
        %v596 = vsub.s32 %v593, %v595
        %v597 = vrot.slane %v589, %v596
        %v599 = vunpack.c.l.s4 1983009808
        %v600 = vunpack.c.0.s8 %v599
        %v601 = vlaneseq
        %v602 = vshrl.u32 %v601, 7
        %v603 = vsub.s32 %v600, %v602
        %v604 = vrot.slane %v590, %v603
        %v605 = vcombine.low %v513, %v519
        %v606 = vcombine.high %v513, %v519
        %v608 = vunpack.c.l.s4 1983009808
        %v609 = vunpack.c.0.s8 %v608
        %v610 = vlaneseq
        %v611 = vshrl.u32 %v610, 7
        %v612 = vsub.s32 %v609, %v611
        %v613 = vrot.slane %v605, %v612
        %v615 = vunpack.c.l.s4 1983009808
        %v616 = vunpack.c.0.s8 %v615
        %v617 = vlaneseq
        %v618 = vshrl.u32 %v617, 7
        %v619 = vsub.s32 %v616, %v618
        %v620 = vrot.slane %v606, %v619
        %v621 = vcombine.low %v597, %v613
        %v622 = vcombine.high %v597, %v613
        %v624 = vunpack.c.l.s4 1934713408
        %v625 = vunpack.c.0.s8 %v624
        %v626 = vlaneseq
        %v627 = vshrl.u32 %v626, 7
        %v628 = vsub.s32 %v625, %v627
        %v629 = vrot.slane %v621, %v628
        %v631 = vunpack.c.l.s4 1934713408
        %v632 = vunpack.c.0.s8 %v631
        %v633 = vlaneseq
        %v634 = vshrl.u32 %v633, 7
        %v635 = vsub.s32 %v632, %v634
        %v636 = vrot.slane %v622, %v635
        %v637 = vcombine.low %v604, %v620
        %v638 = vcombine.high %v604, %v620
        %v640 = vunpack.c.l.s4 1934713408
        %v641 = vunpack.c.0.s8 %v640
        %v642 = vlaneseq
        %v643 = vshrl.u32 %v642, 7
        %v644 = vsub.s32 %v641, %v643
        %v645 = vrot.slane %v637, %v644
        %v647 = vunpack.c.l.s4 1934713408
        %v648 = vunpack.c.0.s8 %v647
        %v649 = vlaneseq
        %v650 = vshrl.u32 %v649, 7
        %v651 = vsub.s32 %v648, %v650
        %v652 = vrot.slane %v638, %v651
        %v653 = vcombine.high %v629, 0.0
        %v654 = vcombine.high %v636, 0.0
        %v655 = vcombine.high %v645, 0.0
        %v656 = vcombine.high %v652, 0.0
        %v657 = vcombine.low %v511, %v517
        %v659 = vunpack.c.l.s4 1983009808
        %v660 = vunpack.c.0.s8 %v659
        %v661 = vlaneseq
        %v662 = vshrl.u32 %v661, 7
        %v663 = vsub.s32 %v660, %v662
        %v664 = vrot.slane %v657, %v663
        %v665 = vcombine.low %v514, %v520
        %v667 = vunpack.c.l.s4 1983009808
        %v668 = vunpack.c.0.s8 %v667
        %v669 = vlaneseq
        %v670 = vshrl.u32 %v669, 7
        %v671 = vsub.s32 %v668, %v670
        %v672 = vrot.slane %v665, %v671
        %v673 = vcombine.low %v664, %v672
        %v674 = vcombine.high %v664, %v672
        %v676 = vunpack.c.l.s4 1934713408
        %v677 = vunpack.c.0.s8 %v676
        %v678 = vlaneseq
        %v679 = vshrl.u32 %v678, 7
        %v680 = vsub.s32 %v677, %v679
        %v681 = vrot.slane %v673, %v680
        %v682 = vcombine.high %v681, 0.0
        %v684 = vunpack.c.l.s4 1934713408
        %v685 = vunpack.c.0.s8 %v684
        %v686 = vlaneseq
        %v687 = vshrl.u32 %v686, 7
        %v688 = vsub.s32 %v685, %v687
        %v689 = vrot.slane %v674, %v688
        %691 = vrot.lane.b32.xlu0 %v585, 18
        %v692 = vpop.permute.xlu0 %691
        %695 = vrot.lane.b32.xlu0 %v568, 36
        %v696 = vpop.permute.xlu0 %695
        %699 = vrot.lane.b32.xlu0 %v586, 54
        %v700 = vpop.permute.xlu0 %699
        %703 = vrot.lane.b32.xlu0 %v577, 72
        %v704 = vpop.permute.xlu0 %703
        %707 = vrot.lane.b32.xlu0 %v587, 90
        %v708 = vpop.permute.xlu0 %707
        %711 = vrot.lane.b32.xlu0 %v584, 108
        %v712 = vpop.permute.xlu0 %711
        %715 = vrot.lane.b32.xlu0 %v588, 126
        %v716 = vpop.permute.xlu0 %715
        %719 = vrot.lane.b32.xlu0 %v629, 16
        %v720 = vpop.permute.xlu0 %719
        %723 = vrot.lane.b32.xlu0 %v653, 34
        %v724 = vpop.permute.xlu0 %723
        %727 = vrot.lane.b32.xlu0 %v636, 52
        %v728 = vpop.permute.xlu0 %727
        %731 = vrot.lane.b32.xlu0 %v654, 70
        %v732 = vpop.permute.xlu0 %731
        %735 = vrot.lane.b32.xlu0 %v645, 88
        %v736 = vpop.permute.xlu0 %735
        %739 = vrot.lane.b32.xlu0 %v655, 106
        %v740 = vpop.permute.xlu0 %739
        %743 = vrot.lane.b32.xlu0 %v652, 124
        %v744 = vpop.permute.xlu0 %743
        %747 = vrot.lane.b32.xlu0 %v656, 14
        %v748 = vpop.permute.xlu0 %747
        %751 = vrot.lane.b32.xlu0 %v681, 32
        %v752 = vpop.permute.xlu0 %751
        %755 = vrot.lane.b32.xlu0 %v682, 50
        %v756 = vpop.permute.xlu0 %755
        %759 = vrot.lane.b32.xlu0 %v689, 68
        %v760 = vpop.permute.xlu0 %759
        %vm762 = vcmask 146432
        %v763 = vsel %vm762, %v561, %v692
        %vm764 = vcmask 293888
        %v765 = vsel %vm764, %v763, %v696
        %vm766 = vcmask 441344
        %v767 = vsel %vm766, %v765, %v700
        %vm768 = vcmask 588800
        %v769 = vsel %vm768, %v767, %v704
        %vm770 = vcmask 736256
        %v771 = vsel %vm770, %v769, %v708
        %vm772 = vcmask 883712
        %v773 = vsel %vm772, %v771, %v712
        %vm774 = vcmask 1031168
        %v775 = vsel %vm774, %v773, %v716
        %vm776 = vcmask 130048
        %v777 = vsel %vm776, %v716, %v720
        %vm778 = vcmask 277504
        %v779 = vsel %vm778, %v777, %v724
        %vm780 = vcmask 424960
        %v781 = vsel %vm780, %v779, %v728
        %vm782 = vcmask 572416
        %v783 = vsel %vm782, %v781, %v732
        %vm784 = vcmask 719872
        %v785 = vsel %vm784, %v783, %v736
        %vm786 = vcmask 867328
        %v787 = vsel %vm786, %v785, %v740
        %vm788 = vcmask 1014784
        %v789 = vsel %vm788, %v787, %v744
        %vm790 = vcmask 113664
        %v791 = vsel %vm790, %v744, %v748
        %vm792 = vcmask 261120
        %v793 = vsel %vm792, %v791, %v752
        %vm794 = vcmask 408576
        %v795 = vsel %vm794, %v793, %v756
        %vm796 = vcmask 556032
        %v797 = vsel %vm796, %v795, %v760
        %v801 = vrot.slane %v775, 4
        %v802 = vrot.slane %v789, 4
        %v803 = vrot.slane %v797, 4
        %804 = vrot.lane.b32.xlu0 %v801, 127
        %v805 = vpop.permute.xlu0 %804
        %806 = vrot.lane.b32.xlu0 %v802, 127
        %v807 = vpop.permute.xlu0 %806
        %808 = vrot.lane.b32.xlu0 %v803, 127
        %v809 = vpop.permute.xlu0 %808
        %vm810 = vcmask 1039360
        %v811 = vsel %vm810, %v805, %v807
        %v812 = vsel %vm810, %v807, %v809
        %816 = vrot.lane.b32.xlu0 %v775, 126
        %v817 = vpop.permute.xlu0 %816
        %818 = vrot.lane.b32.xlu0 %v789, 126
        %v819 = vpop.permute.xlu0 %818
        %820 = vrot.lane.b32.xlu0 %v797, 126
        %v821 = vpop.permute.xlu0 %820
        %v822 = vsel %vm774, %v817, %v819
        %v823 = vsel %vm774, %v819, %v821
        %827 = vrot.lane.b32.xlu0 %v801, 110
        %v828 = vpop.permute.xlu0 %827
        %829 = vrot.lane.b32.xlu0 %v802, 110
        %v830 = vpop.permute.xlu0 %829
        %831 = vrot.lane.b32.xlu0 %v803, 110
        %v832 = vpop.permute.xlu0 %831
        %vm833 = vcmask 900096
        %v834 = vsel %vm833, %v828, %v830
        %v835 = vsel %vm833, %v830, %v832
        %839 = vrot.lane.b32.xlu0 %v775, 109
        %v840 = vpop.permute.xlu0 %839
        %841 = vrot.lane.b32.xlu0 %v789, 109
        %v842 = vpop.permute.xlu0 %841
        %843 = vrot.lane.b32.xlu0 %v797, 109
        %v844 = vpop.permute.xlu0 %843
        %vm845 = vcmask 891904
        %v846 = vsel %vm845, %v840, %v842
        %v847 = vsel %vm845, %v842, %v844
        %851 = vrot.lane.b32.xlu0 %v801, 108
        %v852 = vpop.permute.xlu0 %851
        %853 = vrot.lane.b32.xlu0 %v802, 108
        %v854 = vpop.permute.xlu0 %853
        %855 = vrot.lane.b32.xlu0 %v803, 108
        %v856 = vpop.permute.xlu0 %855
        %v857 = vsel %vm772, %v852, %v854
        %v858 = vsel %vm772, %v854, %v856
        %862 = vrot.lane.b32.xlu0 %v775, 92
        %v863 = vpop.permute.xlu0 %862
        %864 = vrot.lane.b32.xlu0 %v789, 92
        %v865 = vpop.permute.xlu0 %864
        %866 = vrot.lane.b32.xlu0 %v797, 92
        %v867 = vpop.permute.xlu0 %866
        %vm868 = vcmask 752640
        %v869 = vsel %vm868, %v863, %v865
        %v870 = vsel %vm868, %v865, %v867
        %874 = vrot.lane.b32.xlu0 %v801, 91
        %v875 = vpop.permute.xlu0 %874
        %876 = vrot.lane.b32.xlu0 %v802, 91
        %v877 = vpop.permute.xlu0 %876
        %878 = vrot.lane.b32.xlu0 %v803, 91
        %v879 = vpop.permute.xlu0 %878
        %vm880 = vcmask 744448
        %v881 = vsel %vm880, %v875, %v877
        %v882 = vsel %vm880, %v877, %v879
        %886 = vrot.lane.b32.xlu0 %v775, 90
        %v887 = vpop.permute.xlu0 %886
        %888 = vrot.lane.b32.xlu0 %v789, 90
        %v889 = vpop.permute.xlu0 %888
        %890 = vrot.lane.b32.xlu0 %v797, 90
        %v891 = vpop.permute.xlu0 %890
        %v892 = vsel %vm770, %v887, %v889
        %v893 = vsel %vm770, %v889, %v891
        %vm894 = vcmask 1043456
        %v895 = vsel %vm894, %v775, %v811
        %v896 = vsel %vm894, %v789, %v812
        %v897 = vsel %vm894, %v797, %v809
        %v898 = vsel %vm894, %v822, %v834
        %v899 = vsel %vm894, %v823, %v835
        %v900 = vsel %vm894, %v821, %v832
        %v901 = vsel %vm894, %v846, %v857
        %v902 = vsel %vm894, %v847, %v858
        %v903 = vsel %vm894, %v844, %v856
        %v904 = vsel %vm894, %v869, %v881
        %v905 = vsel %vm894, %v870, %v882
        %v906 = vsel %vm894, %v867, %v879
        %v907 = vld [vmem:[%s1] sm:$0xff]
        %v908 = vld [vmem:[%s3] sm:$0xff]
        %910 = vset.pattern.permute.xlu0 0
        %911 = vperm.xlu0 %910, %v908
        %v912 = vpop.permute.xlu0 %911
        %v915 = vsel %vm764, %v907, 0
        %v917 = vsel %vm894, %v892, 0
        %v919 = vsel %vm894, %v893, 0
        %v921 = vsel %vm894, %v891, 0
        %923 = vmatprep.subr.mxu0 %v896
        %924 = vmatpush1.msra.mxu0 %v895
        %925 = vmatprep.subr.mxu0 %v899
        %926 = vmatpush1.msra.mxu0 %v898
        %927 = vmatprep.subr.mxu0 %v902
        %928 = vmatpush1.msra.mxu0 %v901
        %929 = vmatprep.subr.mxu0 %v905
        %930 = vmatpush1.msra.mxu0 %v904
        %931 = vmatprep.subr.mxu0 %v919
        %932 = vmatpush1.msra.mxu0 %v917
        %933 = vmatprep.subr.mxu0 0.0
        %934 = vmatpush1.msra.mxu0 0.0
        %935 = vmatprep.subr.mxu0 0.0
        %936 = vmatpush1.msra.mxu0 0.0
        %937 = vmatprep.subr.mxu0 0.0
        %938 = vmatpush1.msra.mxu0 0.0
        %939 = vmatprep.subr.mxu0 0.0
        %940 = vmatpush1.msra.mxu0 0.0
        %941 = vmatprep.subr.mxu0 0.0
        %942 = vmatpush1.msra.mxu0 0.0
        %943 = vmatprep.subr.mxu0 0.0
        %944 = vmatpush1.msra.mxu0 0.0
        %945 = vmatprep.subr.mxu0 0.0
        %946 = vmatpush1.msra.mxu0 0.0
        %947 = vmatprep.subr.mxu0 0.0
        %948 = vmatpush1.msra.mxu0 0.0
        %949 = vmatprep.subr.mxu0 0.0
        %950 = vmatpush1.msra.mxu0 0.0
        %951 = vmatprep.subr.mxu0 0.0
        %952 = vmatpush1.msra.mxu0 0.0
        %953 = vmatprep.subr.mxu0 0.0
        %954 = vmatpush1.msra.mxu0 0.0
        %955 = vmatprep.subr.mxu0 0.0
        %956 = vmatpush1.msra.mxu0 0.0
        %957 = vmatprep.subr.mxu0 0.0
        %958 = vmatpush1.msra.mxu0 0.0
        %959 = vmatprep.subr.mxu0 0.0
        %960 = vmatpush1.msra.mxu0 0.0
        %961 = vmatprep.subr.mxu0 0.0
        %962 = vmatpush1.msra.mxu0 0.0
        %963 = vmatprep.subr.mxu0 0.0
        %964 = vmatpush1.msra.mxu0 0.0
        %965 = vmatprep.subr.mxu0 0.0
        %966 = vmatpush1.msra.mxu0 0.0
        %967 = vmatprep.subr.mxu0 0.0
        %968 = vmatpush1.msra.mxu0 0.0
        %969 = vmatprep.subr.mxu0 0.0
        %970 = vmatpush1.msra.mxu0 0.0
        %971 = vmatprep.subr.mxu0 0.0
        %972 = vmatpush1.msra.mxu0 0.0
        %973 = vmatprep.subr.mxu0 0.0
        %974 = vmatpush1.msra.mxu0 0.0
        %975 = vmatprep.subr.mxu0 0.0
        %976 = vmatpush1.msra.mxu0 0.0
        %977 = vmatprep.subr.mxu0 0.0
        %978 = vmatpush1.msra.mxu0 0.0
        %979 = vmatprep.subr.mxu0 0.0
        %980 = vmatpush1.msra.mxu0 0.0
        %981 = vmatprep.subr.mxu0 0.0
        %982 = vmatpush1.msra.mxu0 0.0
        %983 = vmatprep.subr.mxu0 0.0
        %984 = vmatpush1.msra.mxu0 0.0
        %985 = vmatprep.subr.mxu0 0.0
        %986 = vmatpush1.msra.mxu0 0.0
        %987 = vmatprep.mubr.f32.mxu0 0.0
        %988 = vmatmul.mubr.f32.gmra.mrb[0].mxu0 %v915
        %v989 = vpop.f32.mrb[0].mxu0
        %v990 = vadd.f32 %v912, %v989
        %v991 = vpop.f32.mrb[0].mxu0
        %v992 = vadd.f32 %v912, %v991
        %993 = vdwg.mxu0
        %994 = vmatprep.subr.mxu0 0.0
        %995 = vmatpush1.msra.mxu0 %v897
        %996 = vmatprep.subr.mxu0 0.0
        %997 = vmatpush1.msra.mxu0 %v900
        %998 = vmatprep.subr.mxu0 0.0
        %999 = vmatpush1.msra.mxu0 %v903
        %1000 = vmatprep.subr.mxu0 0.0
        %1001 = vmatpush1.msra.mxu0 %v906
        %1002 = vmatprep.subr.mxu0 0.0
        %1003 = vmatpush1.msra.mxu0 %v921
        %1004 = vmatprep.subr.mxu0 0.0
        %1005 = vmatpush1.msra.mxu0 0.0
        %1006 = vmatprep.subr.mxu0 0.0
        %1007 = vmatpush1.msra.mxu0 0.0
        %1008 = vmatprep.subr.mxu0 0.0
        %1009 = vmatpush1.msra.mxu0 0.0
        %1010 = vmatprep.subr.mxu0 0.0
        %1011 = vmatpush1.msra.mxu0 0.0
        %1012 = vmatprep.subr.mxu0 0.0
        %1013 = vmatpush1.msra.mxu0 0.0
        %1014 = vmatprep.subr.mxu0 0.0
        %1015 = vmatpush1.msra.mxu0 0.0
        %1016 = vmatprep.subr.mxu0 0.0
        %1017 = vmatpush1.msra.mxu0 0.0
        %1018 = vmatprep.subr.mxu0 0.0
        %1019 = vmatpush1.msra.mxu0 0.0
        %1020 = vmatprep.subr.mxu0 0.0
        %1021 = vmatpush1.msra.mxu0 0.0
        %1022 = vmatprep.subr.mxu0 0.0
        %1023 = vmatpush1.msra.mxu0 0.0
        %1024 = vmatprep.subr.mxu0 0.0
        %1025 = vmatpush1.msra.mxu0 0.0
        %1026 = vmatprep.subr.mxu0 0.0
        %1027 = vmatpush1.msra.mxu0 0.0
        %1028 = vmatprep.subr.mxu0 0.0
        %1029 = vmatpush1.msra.mxu0 0.0
        %1030 = vmatprep.subr.mxu0 0.0
        %1031 = vmatpush1.msra.mxu0 0.0
        %1032 = vmatprep.subr.mxu0 0.0
        %1033 = vmatpush1.msra.mxu0 0.0
        %1034 = vmatprep.subr.mxu0 0.0
        %1035 = vmatpush1.msra.mxu0 0.0
        %1036 = vmatprep.subr.mxu0 0.0
        %1037 = vmatpush1.msra.mxu0 0.0
        %1038 = vmatprep.subr.mxu0 0.0
        %1039 = vmatpush1.msra.mxu0 0.0
        %1040 = vmatprep.subr.mxu0 0.0
        %1041 = vmatpush1.msra.mxu0 0.0
        %1042 = vmatprep.subr.mxu0 0.0
        %1043 = vmatpush1.msra.mxu0 0.0
        %1044 = vmatprep.subr.mxu0 0.0
        %1045 = vmatpush1.msra.mxu0 0.0
        %1046 = vmatprep.subr.mxu0 0.0
        %1047 = vmatpush1.msra.mxu0 0.0
        %1048 = vmatprep.subr.mxu0 0.0
        %1049 = vmatpush1.msra.mxu0 0.0
        %1050 = vmatprep.subr.mxu0 0.0
        %1051 = vmatpush1.msra.mxu0 0.0
        %1052 = vmatprep.subr.mxu0 0.0
        %1053 = vmatpush1.msra.mxu0 0.0
        %1054 = vmatprep.subr.mxu0 0.0
        %1055 = vmatpush1.msra.mxu0 0.0
        %1056 = vmatprep.subr.mxu0 0.0
        %1057 = vmatpush1.msra.mxu0 0.0
        %1058 = vmatprep.mubr.f32.mxu0 0.0
        %1059 = vmatmul.mubr.f32.gmra.mrb[0].mxu0 %v915
        %v1060 = vpop.f32.mrb[0].mxu0
        %v1061 = vadd.f32 %v912, %v1060
        %v1062 = vpop.f32.mrb[0].mxu0
        %1063 = vdwg.mxu0
        %1065 = vrot.lane.b32.xlu0 %v990, 110
        %v1066 = vpop.permute.xlu0 %1065
        %1068 = vrot.lane.b32.xlu0 %v990, 92
        %v1069 = vpop.permute.xlu0 %1068
        %1071 = vrot.lane.b32.xlu0 %v990, 74
        %v1072 = vpop.permute.xlu0 %1071
        %1074 = vrot.lane.b32.xlu0 %v990, 56
        %v1075 = vpop.permute.xlu0 %1074
        %1077 = vrot.lane.b32.xlu0 %v990, 38
        %v1078 = vpop.permute.xlu0 %1077
        %1080 = vrot.lane.b32.xlu0 %v990, 20
        %v1081 = vpop.permute.xlu0 %1080
        %1084 = vrot.lane.b32.xlu0 %v990, 2
        %v1085 = vpop.permute.xlu0 %1084
        %1086 = vrot.lane.b32.xlu0 %v992, 2
        %v1087 = vpop.permute.xlu0 %1086
        %vm1088 = vcmask 15360
        %v1089 = vsel %vm1088, %v1085, %v1087
        %1091 = vrot.lane.b32.xlu0 %v992, 112
        %v1092 = vpop.permute.xlu0 %1091
        %1094 = vrot.lane.b32.xlu0 %v992, 94
        %v1095 = vpop.permute.xlu0 %1094
        %1097 = vrot.lane.b32.xlu0 %v992, 76
        %v1098 = vpop.permute.xlu0 %1097
        %1100 = vrot.lane.b32.xlu0 %v992, 58
        %v1101 = vpop.permute.xlu0 %1100
        %1103 = vrot.lane.b32.xlu0 %v992, 40
        %v1104 = vpop.permute.xlu0 %1103
        %1106 = vrot.lane.b32.xlu0 %v992, 22
        %v1107 = vpop.permute.xlu0 %1106
        %1110 = vrot.lane.b32.xlu0 %v992, 4
        %v1111 = vpop.permute.xlu0 %1110
        %1112 = vrot.lane.b32.xlu0 %v1061, 4
        %v1113 = vpop.permute.xlu0 %1112
        %vm1114 = vcmask 31744
        %v1115 = vsel %vm1114, %v1111, %v1113
        %1117 = vrot.lane.b32.xlu0 %v1061, 114
        %v1118 = vpop.permute.xlu0 %1117
        %v1120 = vcombine.low %v990, %v1069
        %v1121 = vcombine.high %v990, %v1069
        %v1123 = vunpack.c.l.s4 1983009808
        %v1124 = vunpack.c.0.s8 %v1123
        %v1125 = vlaneseq
        %v1126 = vshrl.u32 %v1125, 7
        %v1127 = vsub.s32 %v1124, %v1126
        %v1128 = vrot.slane %v1120, %v1127
        %v1130 = vunpack.c.l.s4 1983009808
        %v1131 = vunpack.c.0.s8 %v1130
        %v1132 = vlaneseq
        %v1133 = vshrl.u32 %v1132, 7
        %v1134 = vsub.s32 %v1131, %v1133
        %v1135 = vrot.slane %v1121, %v1134
        %v1136 = vcombine.low %v1066, %v1072
        %v1137 = vcombine.high %v1066, %v1072
        %v1139 = vunpack.c.l.s4 1983009808
        %v1140 = vunpack.c.0.s8 %v1139
        %v1141 = vlaneseq
        %v1142 = vshrl.u32 %v1141, 7
        %v1143 = vsub.s32 %v1140, %v1142
        %v1144 = vrot.slane %v1136, %v1143
        %v1146 = vunpack.c.l.s4 1983009808
        %v1147 = vunpack.c.0.s8 %v1146
        %v1148 = vlaneseq
        %v1149 = vshrl.u32 %v1148, 7
        %v1150 = vsub.s32 %v1147, %v1149
        %v1151 = vrot.slane %v1137, %v1150
        %v1152 = vcombine.low %v1075, %v1081
        %v1153 = vcombine.high %v1075, %v1081
        %v1155 = vunpack.c.l.s4 1983009808
        %v1156 = vunpack.c.0.s8 %v1155
        %v1157 = vlaneseq
        %v1158 = vshrl.u32 %v1157, 7
        %v1159 = vsub.s32 %v1156, %v1158
        %v1160 = vrot.slane %v1152, %v1159
        %v1162 = vunpack.c.l.s4 1983009808
        %v1163 = vunpack.c.0.s8 %v1162
        %v1164 = vlaneseq
        %v1165 = vshrl.u32 %v1164, 7
        %v1166 = vsub.s32 %v1163, %v1165
        %v1167 = vrot.slane %v1153, %v1166
        %v1168 = vcombine.low %v1078, %v1089
        %v1169 = vcombine.high %v1078, %v1089
        %v1171 = vunpack.c.l.s4 1983009808
        %v1172 = vunpack.c.0.s8 %v1171
        %v1173 = vlaneseq
        %v1174 = vshrl.u32 %v1173, 7
        %v1175 = vsub.s32 %v1172, %v1174
        %v1176 = vrot.slane %v1168, %v1175
        %v1178 = vunpack.c.l.s4 1983009808
        %v1179 = vunpack.c.0.s8 %v1178
        %v1180 = vlaneseq
        %v1181 = vshrl.u32 %v1180, 7
        %v1182 = vsub.s32 %v1179, %v1181
        %v1183 = vrot.slane %v1169, %v1182
        %v1184 = vcombine.low %v1128, %v1144
        %v1185 = vcombine.high %v1128, %v1144
        %v1187 = vunpack.c.l.s4 1934713408
        %v1188 = vunpack.c.0.s8 %v1187
        %v1189 = vlaneseq
        %v1190 = vshrl.u32 %v1189, 7
        %v1191 = vsub.s32 %v1188, %v1190
        %v1192 = vrot.slane %v1184, %v1191
        %v1194 = vunpack.c.l.s4 1934713408
        %v1195 = vunpack.c.0.s8 %v1194
        %v1196 = vlaneseq
        %v1197 = vshrl.u32 %v1196, 7
        %v1198 = vsub.s32 %v1195, %v1197
        %v1199 = vrot.slane %v1185, %v1198
        %v1200 = vcombine.low %v1135, %v1151
        %v1201 = vcombine.high %v1135, %v1151
        %v1203 = vunpack.c.l.s4 1934713408
        %v1204 = vunpack.c.0.s8 %v1203
        %v1205 = vlaneseq
        %v1206 = vshrl.u32 %v1205, 7
        %v1207 = vsub.s32 %v1204, %v1206
        %v1208 = vrot.slane %v1200, %v1207
        %v1210 = vunpack.c.l.s4 1934713408
        %v1211 = vunpack.c.0.s8 %v1210
        %v1212 = vlaneseq
        %v1213 = vshrl.u32 %v1212, 7
        %v1214 = vsub.s32 %v1211, %v1213
        %v1215 = vrot.slane %v1201, %v1214
        %v1216 = vcombine.low %v1160, %v1176
        %v1217 = vcombine.high %v1160, %v1176
        %v1219 = vunpack.c.l.s4 1934713408
        %v1220 = vunpack.c.0.s8 %v1219
        %v1221 = vlaneseq
        %v1222 = vshrl.u32 %v1221, 7
        %v1223 = vsub.s32 %v1220, %v1222
        %v1224 = vrot.slane %v1216, %v1223
        %v1226 = vunpack.c.l.s4 1934713408
        %v1227 = vunpack.c.0.s8 %v1226
        %v1228 = vlaneseq
        %v1229 = vshrl.u32 %v1228, 7
        %v1230 = vsub.s32 %v1227, %v1229
        %v1231 = vrot.slane %v1217, %v1230
        %v1232 = vcombine.low %v1167, %v1183
        %v1233 = vcombine.high %v1167, %v1183
        %v1235 = vunpack.c.l.s4 1934713408
        %v1236 = vunpack.c.0.s8 %v1235
        %v1237 = vlaneseq
        %v1238 = vshrl.u32 %v1237, 7
        %v1239 = vsub.s32 %v1236, %v1238
        %v1240 = vrot.slane %v1232, %v1239
        %v1242 = vunpack.c.l.s4 1934713408
        %v1243 = vunpack.c.0.s8 %v1242
        %v1244 = vlaneseq
        %v1245 = vshrl.u32 %v1244, 7
        %v1246 = vsub.s32 %v1243, %v1245
        %v1247 = vrot.slane %v1233, %v1246
        %v1248 = vcombine.low %v1192, %v1224
        %v1249 = vcombine.high %v1192, %v1224
        %v1250 = vcombine.low %v1199, %v1231
        %v1251 = vcombine.high %v1199, %v1231
        %v1252 = vcombine.low %v1208, %v1240
        %v1253 = vcombine.high %v1208, %v1240
        %v1254 = vcombine.low %v1215, %v1247
        %v1255 = vcombine.high %v1215, %v1247
        %v1256 = vcombine.low %v1092, %v1098
        %v1257 = vcombine.high %v1092, %v1098
        %v1259 = vunpack.c.l.s4 1983009808
        %v1260 = vunpack.c.0.s8 %v1259
        %v1261 = vlaneseq
        %v1262 = vshrl.u32 %v1261, 7
        %v1263 = vsub.s32 %v1260, %v1262
        %v1264 = vrot.slane %v1256, %v1263
        %v1266 = vunpack.c.l.s4 1983009808
        %v1267 = vunpack.c.0.s8 %v1266
        %v1268 = vlaneseq
        %v1269 = vshrl.u32 %v1268, 7
        %v1270 = vsub.s32 %v1267, %v1269
        %v1271 = vrot.slane %v1257, %v1270
        %v1272 = vcombine.low %v1095, %v1101
        %v1273 = vcombine.high %v1095, %v1101
        %v1275 = vunpack.c.l.s4 1983009808
        %v1276 = vunpack.c.0.s8 %v1275
        %v1277 = vlaneseq
        %v1278 = vshrl.u32 %v1277, 7
        %v1279 = vsub.s32 %v1276, %v1278
        %v1280 = vrot.slane %v1272, %v1279
        %v1282 = vunpack.c.l.s4 1983009808
        %v1283 = vunpack.c.0.s8 %v1282
        %v1284 = vlaneseq
        %v1285 = vshrl.u32 %v1284, 7
        %v1286 = vsub.s32 %v1283, %v1285
        %v1287 = vrot.slane %v1273, %v1286
        %v1288 = vcombine.low %v1104, %v1115
        %v1289 = vcombine.high %v1104, %v1115
        %v1291 = vunpack.c.l.s4 1983009808
        %v1292 = vunpack.c.0.s8 %v1291
        %v1293 = vlaneseq
        %v1294 = vshrl.u32 %v1293, 7
        %v1295 = vsub.s32 %v1292, %v1294
        %v1296 = vrot.slane %v1288, %v1295
        %v1298 = vunpack.c.l.s4 1983009808
        %v1299 = vunpack.c.0.s8 %v1298
        %v1300 = vlaneseq
        %v1301 = vshrl.u32 %v1300, 7
        %v1302 = vsub.s32 %v1299, %v1301
        %v1303 = vrot.slane %v1289, %v1302
        %v1304 = vcombine.low %v1107, %v1118
        %v1305 = vcombine.high %v1107, %v1118
        %v1307 = vunpack.c.l.s4 1983009808
        %v1308 = vunpack.c.0.s8 %v1307
        %v1309 = vlaneseq
        %v1310 = vshrl.u32 %v1309, 7
        %v1311 = vsub.s32 %v1308, %v1310
        %v1312 = vrot.slane %v1304, %v1311
        %v1314 = vunpack.c.l.s4 1983009808
        %v1315 = vunpack.c.0.s8 %v1314
        %v1316 = vlaneseq
        %v1317 = vshrl.u32 %v1316, 7
        %v1318 = vsub.s32 %v1315, %v1317
        %v1319 = vrot.slane %v1305, %v1318
        %v1320 = vcombine.low %v1264, %v1280
        %v1321 = vcombine.high %v1264, %v1280
        %v1323 = vunpack.c.l.s4 1934713408
        %v1324 = vunpack.c.0.s8 %v1323
        %v1325 = vlaneseq
        %v1326 = vshrl.u32 %v1325, 7
        %v1327 = vsub.s32 %v1324, %v1326
        %v1328 = vrot.slane %v1320, %v1327
        %v1330 = vunpack.c.l.s4 1934713408
        %v1331 = vunpack.c.0.s8 %v1330
        %v1332 = vlaneseq
        %v1333 = vshrl.u32 %v1332, 7
        %v1334 = vsub.s32 %v1331, %v1333
        %v1335 = vrot.slane %v1321, %v1334
        %v1336 = vcombine.low %v1271, %v1287
        %v1337 = vcombine.high %v1271, %v1287
        %v1339 = vunpack.c.l.s4 1934713408
        %v1340 = vunpack.c.0.s8 %v1339
        %v1341 = vlaneseq
        %v1342 = vshrl.u32 %v1341, 7
        %v1343 = vsub.s32 %v1340, %v1342
        %v1344 = vrot.slane %v1336, %v1343
        %v1346 = vunpack.c.l.s4 1934713408
        %v1347 = vunpack.c.0.s8 %v1346
        %v1348 = vlaneseq
        %v1349 = vshrl.u32 %v1348, 7
        %v1350 = vsub.s32 %v1347, %v1349
        %v1351 = vrot.slane %v1337, %v1350
        %v1352 = vcombine.low %v1296, %v1312
        %v1353 = vcombine.high %v1296, %v1312
        %v1355 = vunpack.c.l.s4 1934713408
        %v1356 = vunpack.c.0.s8 %v1355
        %v1357 = vlaneseq
        %v1358 = vshrl.u32 %v1357, 7
        %v1359 = vsub.s32 %v1356, %v1358
        %v1360 = vrot.slane %v1352, %v1359
        %v1362 = vunpack.c.l.s4 1934713408
        %v1363 = vunpack.c.0.s8 %v1362
        %v1364 = vlaneseq
        %v1365 = vshrl.u32 %v1364, 7
        %v1366 = vsub.s32 %v1363, %v1365
        %v1367 = vrot.slane %v1353, %v1366
        %v1368 = vcombine.low %v1303, %v1319
        %v1369 = vcombine.high %v1303, %v1319
        %v1371 = vunpack.c.l.s4 1934713408
        %v1372 = vunpack.c.0.s8 %v1371
        %v1373 = vlaneseq
        %v1374 = vshrl.u32 %v1373, 7
        %v1375 = vsub.s32 %v1372, %v1374
        %v1376 = vrot.slane %v1368, %v1375
        %v1378 = vunpack.c.l.s4 1934713408
        %v1379 = vunpack.c.0.s8 %v1378
        %v1380 = vlaneseq
        %v1381 = vshrl.u32 %v1380, 7
        %v1382 = vsub.s32 %v1379, %v1381
        %v1383 = vrot.slane %v1369, %v1382
        %v1384 = vcombine.low %v1328, %v1360
        %v1385 = vcombine.high %v1328, %v1360
        %v1386 = vcombine.low %v1335, %v1367
        %v1387 = vcombine.high %v1335, %v1367
        %v1388 = vcombine.low %v1344, %v1376
        %v1389 = vcombine.high %v1344, %v1376
        %v1390 = vcombine.low %v1351, %v1383
        %v1391 = vcombine.high %v1351, %v1383
        %v1392 = vcombine.low %v1248, %v1250
        %v1393 = vcombine.high %v1248, %v1250
        %v1395 = vunpack.c.l.s4 1983009808
        %v1396 = vunpack.c.0.s8 %v1395
        %v1397 = vlaneseq
        %v1398 = vshrl.u32 %v1397, 7
        %v1399 = vsub.s32 %v1396, %v1398
        %v1400 = vrot.slane %v1392, %v1399
        %v1402 = vunpack.c.l.s4 1983009808
        %v1403 = vunpack.c.0.s8 %v1402
        %v1404 = vlaneseq
        %v1405 = vshrl.u32 %v1404, 7
        %v1406 = vsub.s32 %v1403, %v1405
        %v1407 = vrot.slane %v1393, %v1406
        %v1408 = vcombine.low %v1249, %v1251
        %v1409 = vcombine.high %v1249, %v1251
        %v1411 = vunpack.c.l.s4 1983009808
        %v1412 = vunpack.c.0.s8 %v1411
        %v1413 = vlaneseq
        %v1414 = vshrl.u32 %v1413, 7
        %v1415 = vsub.s32 %v1412, %v1414
        %v1416 = vrot.slane %v1408, %v1415
        %v1418 = vunpack.c.l.s4 1983009808
        %v1419 = vunpack.c.0.s8 %v1418
        %v1420 = vlaneseq
        %v1421 = vshrl.u32 %v1420, 7
        %v1422 = vsub.s32 %v1419, %v1421
        %v1423 = vrot.slane %v1409, %v1422
        %v1424 = vcombine.low %v1252, %v1254
        %v1425 = vcombine.high %v1252, %v1254
        %v1427 = vunpack.c.l.s4 1983009808
        %v1428 = vunpack.c.0.s8 %v1427
        %v1429 = vlaneseq
        %v1430 = vshrl.u32 %v1429, 7
        %v1431 = vsub.s32 %v1428, %v1430
        %v1432 = vrot.slane %v1424, %v1431
        %v1434 = vunpack.c.l.s4 1983009808
        %v1435 = vunpack.c.0.s8 %v1434
        %v1436 = vlaneseq
        %v1437 = vshrl.u32 %v1436, 7
        %v1438 = vsub.s32 %v1435, %v1437
        %v1439 = vrot.slane %v1425, %v1438
        %v1440 = vcombine.low %v1253, %v1255
        %v1441 = vcombine.high %v1253, %v1255
        %v1443 = vunpack.c.l.s4 1983009808
        %v1444 = vunpack.c.0.s8 %v1443
        %v1445 = vlaneseq
        %v1446 = vshrl.u32 %v1445, 7
        %v1447 = vsub.s32 %v1444, %v1446
        %v1448 = vrot.slane %v1440, %v1447
        %v1450 = vunpack.c.l.s4 1983009808
        %v1451 = vunpack.c.0.s8 %v1450
        %v1452 = vlaneseq
        %v1453 = vshrl.u32 %v1452, 7
        %v1454 = vsub.s32 %v1451, %v1453
        %v1455 = vrot.slane %v1441, %v1454
        %v1456 = vcombine.low %v1400, %v1416
        %v1457 = vcombine.high %v1400, %v1416
        %v1459 = vunpack.c.l.s4 1934713408
        %v1460 = vunpack.c.0.s8 %v1459
        %v1461 = vlaneseq
        %v1462 = vshrl.u32 %v1461, 7
        %v1463 = vsub.s32 %v1460, %v1462
        %v1464 = vrot.slane %v1456, %v1463
        %v1466 = vunpack.c.l.s4 1934713408
        %v1467 = vunpack.c.0.s8 %v1466
        %v1468 = vlaneseq
        %v1469 = vshrl.u32 %v1468, 7
        %v1470 = vsub.s32 %v1467, %v1469
        %v1471 = vrot.slane %v1457, %v1470
        %v1472 = vcombine.low %v1407, %v1423
        %v1473 = vcombine.high %v1407, %v1423
        %v1475 = vunpack.c.l.s4 1934713408
        %v1476 = vunpack.c.0.s8 %v1475
        %v1477 = vlaneseq
        %v1478 = vshrl.u32 %v1477, 7
        %v1479 = vsub.s32 %v1476, %v1478
        %v1480 = vrot.slane %v1472, %v1479
        %v1482 = vunpack.c.l.s4 1934713408
        %v1483 = vunpack.c.0.s8 %v1482
        %v1484 = vlaneseq
        %v1485 = vshrl.u32 %v1484, 7
        %v1486 = vsub.s32 %v1483, %v1485
        %v1487 = vrot.slane %v1473, %v1486
        %v1488 = vcombine.low %v1432, %v1448
        %v1489 = vcombine.high %v1432, %v1448
        %v1491 = vunpack.c.l.s4 1934713408
        %v1492 = vunpack.c.0.s8 %v1491
        %v1493 = vlaneseq
        %v1494 = vshrl.u32 %v1493, 7
        %v1495 = vsub.s32 %v1492, %v1494
        %v1496 = vrot.slane %v1488, %v1495
        %v1498 = vunpack.c.l.s4 1934713408
        %v1499 = vunpack.c.0.s8 %v1498
        %v1500 = vlaneseq
        %v1501 = vshrl.u32 %v1500, 7
        %v1502 = vsub.s32 %v1499, %v1501
        %v1503 = vrot.slane %v1489, %v1502
        %v1504 = vcombine.low %v1439, %v1455
        %v1505 = vcombine.high %v1439, %v1455
        %v1507 = vunpack.c.l.s4 1934713408
        %v1508 = vunpack.c.0.s8 %v1507
        %v1509 = vlaneseq
        %v1510 = vshrl.u32 %v1509, 7
        %v1511 = vsub.s32 %v1508, %v1510
        %v1512 = vrot.slane %v1504, %v1511
        %v1514 = vunpack.c.l.s4 1934713408
        %v1515 = vunpack.c.0.s8 %v1514
        %v1516 = vlaneseq
        %v1517 = vshrl.u32 %v1516, 7
        %v1518 = vsub.s32 %v1515, %v1517
        %v1519 = vrot.slane %v1505, %v1518
        %v1520 = vcombine.low %v1464, %v1496
        %v1521 = vcombine.high %v1464, %v1496
        %v1522 = vcombine.low %v1471, %v1503
        %v1523 = vcombine.high %v1471, %v1503
        %v1524 = vcombine.low %v1480, %v1512
        %v1525 = vcombine.high %v1480, %v1512
        %v1526 = vcombine.low %v1487, %v1519
        %v1527 = vcombine.high %v1487, %v1519
        %v1528 = vcombine.low %v1384, %v1386
        %v1529 = vcombine.high %v1384, %v1386
        %v1531 = vunpack.c.l.s4 1983009808
        %v1532 = vunpack.c.0.s8 %v1531
        %v1533 = vlaneseq
        %v1534 = vshrl.u32 %v1533, 7
        %v1535 = vsub.s32 %v1532, %v1534
        %v1536 = vrot.slane %v1528, %v1535
        %v1538 = vunpack.c.l.s4 1983009808
        %v1539 = vunpack.c.0.s8 %v1538
        %v1540 = vlaneseq
        %v1541 = vshrl.u32 %v1540, 7
        %v1542 = vsub.s32 %v1539, %v1541
        %v1543 = vrot.slane %v1529, %v1542
        %v1544 = vcombine.low %v1385, %v1387
        %v1545 = vcombine.high %v1385, %v1387
        %v1547 = vunpack.c.l.s4 1983009808
        %v1548 = vunpack.c.0.s8 %v1547
        %v1549 = vlaneseq
        %v1550 = vshrl.u32 %v1549, 7
        %v1551 = vsub.s32 %v1548, %v1550
        %v1552 = vrot.slane %v1544, %v1551
        %v1554 = vunpack.c.l.s4 1983009808
        %v1555 = vunpack.c.0.s8 %v1554
        %v1556 = vlaneseq
        %v1557 = vshrl.u32 %v1556, 7
        %v1558 = vsub.s32 %v1555, %v1557
        %v1559 = vrot.slane %v1545, %v1558
        %v1560 = vcombine.low %v1388, %v1390
        %v1561 = vcombine.high %v1388, %v1390
        %v1563 = vunpack.c.l.s4 1983009808
        %v1564 = vunpack.c.0.s8 %v1563
        %v1565 = vlaneseq
        %v1566 = vshrl.u32 %v1565, 7
        %v1567 = vsub.s32 %v1564, %v1566
        %v1568 = vrot.slane %v1560, %v1567
        %v1570 = vunpack.c.l.s4 1983009808
        %v1571 = vunpack.c.0.s8 %v1570
        %v1572 = vlaneseq
        %v1573 = vshrl.u32 %v1572, 7
        %v1574 = vsub.s32 %v1571, %v1573
        %v1575 = vrot.slane %v1561, %v1574
        %v1576 = vcombine.low %v1389, %v1391
        %v1577 = vcombine.high %v1389, %v1391
        %v1579 = vunpack.c.l.s4 1983009808
        %v1580 = vunpack.c.0.s8 %v1579
        %v1581 = vlaneseq
        %v1582 = vshrl.u32 %v1581, 7
        %v1583 = vsub.s32 %v1580, %v1582
        %v1584 = vrot.slane %v1576, %v1583
        %v1586 = vunpack.c.l.s4 1983009808
        %v1587 = vunpack.c.0.s8 %v1586
        %v1588 = vlaneseq
        %v1589 = vshrl.u32 %v1588, 7
        %v1590 = vsub.s32 %v1587, %v1589
        %v1591 = vrot.slane %v1577, %v1590
        %v1592 = vcombine.low %v1536, %v1552
        %v1593 = vcombine.high %v1536, %v1552
        %v1595 = vunpack.c.l.s4 1934713408
        %v1596 = vunpack.c.0.s8 %v1595
        %v1597 = vlaneseq
        %v1598 = vshrl.u32 %v1597, 7
        %v1599 = vsub.s32 %v1596, %v1598
        %v1600 = vrot.slane %v1592, %v1599
        %v1602 = vunpack.c.l.s4 1934713408
        %v1603 = vunpack.c.0.s8 %v1602
        %v1604 = vlaneseq
        %v1605 = vshrl.u32 %v1604, 7
        %v1606 = vsub.s32 %v1603, %v1605
        %v1607 = vrot.slane %v1593, %v1606
        %v1608 = vcombine.low %v1543, %v1559
        %v1609 = vcombine.high %v1543, %v1559
        %v1611 = vunpack.c.l.s4 1934713408
        %v1612 = vunpack.c.0.s8 %v1611
        %v1613 = vlaneseq
        %v1614 = vshrl.u32 %v1613, 7
        %v1615 = vsub.s32 %v1612, %v1614
        %v1616 = vrot.slane %v1608, %v1615
        %v1618 = vunpack.c.l.s4 1934713408
        %v1619 = vunpack.c.0.s8 %v1618
        %v1620 = vlaneseq
        %v1621 = vshrl.u32 %v1620, 7
        %v1622 = vsub.s32 %v1619, %v1621
        %v1623 = vrot.slane %v1609, %v1622
        %v1624 = vcombine.low %v1568, %v1584
        %v1625 = vcombine.high %v1568, %v1584
        %v1627 = vunpack.c.l.s4 1934713408
        %v1628 = vunpack.c.0.s8 %v1627
        %v1629 = vlaneseq
        %v1630 = vshrl.u32 %v1629, 7
        %v1631 = vsub.s32 %v1628, %v1630
        %v1632 = vrot.slane %v1624, %v1631
        %v1634 = vunpack.c.l.s4 1934713408
        %v1635 = vunpack.c.0.s8 %v1634
        %v1636 = vlaneseq
        %v1637 = vshrl.u32 %v1636, 7
        %v1638 = vsub.s32 %v1635, %v1637
        %v1639 = vrot.slane %v1625, %v1638
        %v1640 = vcombine.low %v1575, %v1591
        %v1641 = vcombine.high %v1575, %v1591
        %v1643 = vunpack.c.l.s4 1934713408
        %v1644 = vunpack.c.0.s8 %v1643
        %v1645 = vlaneseq
        %v1646 = vshrl.u32 %v1645, 7
        %v1647 = vsub.s32 %v1644, %v1646
        %v1648 = vrot.slane %v1640, %v1647
        %v1650 = vunpack.c.l.s4 1934713408
        %v1651 = vunpack.c.0.s8 %v1650
        %v1652 = vlaneseq
        %v1653 = vshrl.u32 %v1652, 7
        %v1654 = vsub.s32 %v1651, %v1653
        %v1655 = vrot.slane %v1641, %v1654
        %v1656 = vcombine.low %v1600, %v1632
        %v1657 = vcombine.high %v1600, %v1632
        %v1658 = vcombine.low %v1607, %v1639
        %v1659 = vcombine.high %v1607, %v1639
        %v1660 = vcombine.low %v1616, %v1648
        %v1661 = vcombine.high %v1616, %v1648
        %v1662 = vcombine.low %v1623, %v1655
        %v1663 = vcombine.high %v1623, %v1655
        %1665 = vrot.lane.b32.xlu0 %v1521, 16
        %v1666 = vpop.permute.xlu0 %1665
        %1669 = vrot.lane.b32.xlu0 %v1522, 32
        %v1670 = vpop.permute.xlu0 %1669
        %1673 = vrot.lane.b32.xlu0 %v1523, 48
        %v1674 = vpop.permute.xlu0 %1673
        %1677 = vrot.lane.b32.xlu0 %v1524, 64
        %v1678 = vpop.permute.xlu0 %1677
        %1681 = vrot.lane.b32.xlu0 %v1525, 80
        %v1682 = vpop.permute.xlu0 %1681
        %1685 = vrot.lane.b32.xlu0 %v1526, 96
        %v1686 = vpop.permute.xlu0 %1685
        %1689 = vrot.lane.b32.xlu0 %v1527, 112
        %v1690 = vpop.permute.xlu0 %1689
        %1693 = vrot.lane.b32.xlu0 %v1657, 16
        %v1694 = vpop.permute.xlu0 %1693
        %1697 = vrot.lane.b32.xlu0 %v1658, 32
        %v1698 = vpop.permute.xlu0 %1697
        %1701 = vrot.lane.b32.xlu0 %v1659, 48
        %v1702 = vpop.permute.xlu0 %1701
        %1705 = vrot.lane.b32.xlu0 %v1660, 64
        %v1706 = vpop.permute.xlu0 %1705
        %1709 = vrot.lane.b32.xlu0 %v1661, 80
        %v1710 = vpop.permute.xlu0 %1709
        %1713 = vrot.lane.b32.xlu0 %v1662, 96
        %v1714 = vpop.permute.xlu0 %1713
        %1717 = vrot.lane.b32.xlu0 %v1663, 112
        %v1718 = vpop.permute.xlu0 %1717
        %v1720 = vsel %vm776, %v1520, %v1666
        %v1721 = vsel %vm792, %v1720, %v1670
        %vm1722 = vcmask 392192
        %v1723 = vsel %vm1722, %v1721, %v1674
        %vm1724 = vcmask 523264
        %v1725 = vsel %vm1724, %v1723, %v1678
        %vm1726 = vcmask 654336
        %v1727 = vsel %vm1726, %v1725, %v1682
        %vm1728 = vcmask 785408
        %v1729 = vsel %vm1728, %v1727, %v1686
        %vm1730 = vcmask 916480
        %v1731 = vsel %vm1730, %v1729, %v1690
        %v1732 = vsel %vm776, %v1656, %v1694
        %v1733 = vsel %vm792, %v1732, %v1698
        %v1734 = vsel %vm1722, %v1733, %v1702
        %v1735 = vsel %vm1724, %v1734, %v1706
        %v1736 = vsel %vm1726, %v1735, %v1710
        %v1737 = vsel %vm1728, %v1736, %v1714
        %v1738 = vsel %vm1730, %v1737, %v1718
        %1739 = vst [vmem:[%s213] sm:$0xff] %v1731
        %1740 = vst [vmem:[%s213 + $0x8] sm:$0xff] %v1738
        %s1741 = sand.u32 %s118, 1
        %s1742 = scalar_lea.sflag [#allocation5], %s1741
        %s1743 = sand.u32 %s118, 1
        %s1744 = smul.addr %s1743, 16
        %s1745 = scalar_lea.vmem [#allocation6], %s1744
        // Predicated region
        $region41: #{tpu_custom_call.1} parent=35 // pred_check
          %p1746 = pneg %p128
        $region42: #{tpu_custom_call.1} parent=35 // pred_check_branch
          %1748 = sbr.rel (%p1746) target = $region44
        $region43: #{tpu_custom_call.1} parent=35 // pred_region
          %s1750 = ssub.s32 256, 256
          %1751 = vsyncadd %s1742, %s1750
          %s1752 = smul.addr %s21, 2
          %s1753 = smul.addr %s1752, 128
          %s1754 = scalar_lea.hbm %s4, %s1753
          %s1756 = sshll.u32 %s1745, 4
          %s1757 = int_to_ptr.vmem [resolvable:$true] %s1756
          %1759 = dma.vmem_to_hbm [thread:$0]  %s1757, 256, %s1754, %s1742
        $region44: #{tpu_custom_call.1} parent=35 // pred_fallthru
          _
      $region36: #{tpu_custom_call.1} parent=5 // pred_fallthru
        _
      %p1760 = scmp.le.s32.totalorder 2, %s16
      // Predicated region
      $region45: #{tpu_custom_call.1} parent=5 // pred_check
        %p1761 = pneg %p1760
      $region46: #{tpu_custom_call.1} parent=5 // pred_check_branch
        %1763 = sbr.rel (%p1761) target = $region48
      $region47: #{tpu_custom_call.1} parent=5 // pred_region
        %s1764 = ssub.s32 %s16, 2
        // Predicated region
        $region49: #{tpu_custom_call.1} parent=47 // pred_check
          %p1765 = pneg %p134
        $region50: #{tpu_custom_call.1} parent=47 // pred_check_branch
          %1767 = sbr.rel (%p1765) target = $region52
        $region51: #{tpu_custom_call.1} parent=47 // pred_region
          %s1768 = sand.u32 %s119, 1
          %s1769 = scalar_lea.sflag [#allocation5], %s1768
          %s1770 = sand.u32 %s119, 1
          %s1771 = smul.addr %s1770, 16
          %s1772 = scalar_lea.vmem [#allocation6], %s1771
          %1773 = dma.done %s1769, 256
        $region52: #{tpu_custom_call.1} parent=47 // pred_fallthru
          _
      $region48: #{tpu_custom_call.1} parent=5 // pred_fallthru
        _
    $region6: #{tpu_custom_call.1} parent=1 // loop_footer
      %s20 = sadd.s32 1, %s16
    $region7: #{tpu_custom_call.1} parent=1 // loop_footer_branch
      %15 = sbr.rel target = $region3
    $region8: #{tpu_custom_call.1} parent=1 // loop_exit
      _
    %1774 = vsyncpa [#allocation4], 1
    %s1775 = scalar_lea.sflag [#allocation4], 1
    %1776 = vsyncpa %s1775, 1
    %1777 = vsyncpa [#allocation5], 1
    %s1778 = scalar_lea.sflag [#allocation5], 1
    %1779 = vsyncpa %s1778, 1

</llo_original>
